<compile_context>
chip_gen: v6e
topology: v6e:2x2x1
jax: 0.10.0
libtpu: 0.0.40
codegen_flags: <defaults>
</compile_context>

<pallas_src>
import functools

import jax
import jax.numpy as jnp
from jax.experimental import pallas as pl
from jax.experimental.pallas import tpu as pltpu


def _bin_rot_kernel(feat_ref,     # VMEM (1, C, T)   feature tile, NCHW layout
                    ind_ref,      # VMEM (1, K, 1)   int32 gather indices
                    rotbin_ref,   # VMEM (1, 2, K)   int32
                    rotres_ref,   # VMEM (1, 2, K)   f32
                    mask_ref,     # VMEM (1, 1, K)   f32
                    out_ref,      # VMEM (1, 1, 8)   per-batch partial sums
                    acc_ref,      # VMEM (C, K) f32  gathered predictions
                    *, hw, t_blk):
    t = pl.program_id(1)

    @pl.when(t == 0)
    def _init():
        acc_ref[...] = jnp.zeros_like(acc_ref)

    feat = feat_ref[0].astype(jnp.float32)                    # (C, T)
    idx = ind_ref[0]                                          # (K, 1) int32
    K = idx.shape[0]

    # Global spatial positions covered by this tile, laid out (K, T) so the
    # one-hot lives K-on-sublanes / T-on-lanes (vreg friendly for small K).
    pos = jax.lax.broadcasted_iota(jnp.int32, (K, t_blk), 1) + t * t_blk
    onehot = (pos == idx).astype(jnp.float32)                 # (K, T)

    if hw % t_blk != 0:
        # Last tile over-reads past HW: zero the undefined tail so that
        # 0 * garbage can never produce NaN/Inf inside the matmul.
        col = jax.lax.broadcasted_iota(jnp.int32, feat.shape, 1) + t * t_blk
        feat = jnp.where(col < hw, feat, 0.0)

    # Fused transpose + gather on the MXU:
    #   acc[c, k] += sum_t feat[c, t] * onehot[k, t]
    # Exactly one nonzero term per (c, k) over the full HW sweep, so with
    # HIGHEST precision this reproduces the f32 feature values exactly.
    acc_ref[...] += jax.lax.dot_general(
        feat, onehot,
        dimension_numbers=(((1,), (1,)), ((), ())),
        preferred_element_type=jnp.float32,
        precision=jax.lax.Precision.HIGHEST)

    @pl.when(t == pl.num_programs(1) - 1)
    def _finalize():
        pred = acc_ref[...]                 # (8, K)
        m = mask_ref[0]                     # (1, K)
        tb = rotbin_ref[0]                  # (2, K) int32
        tres = rotres_ref[0]                # (2, K) f32

        # masked 2-class cross entropy per object (logits zeroed by mask)
        def bin_ce(l0, l1, tcls):
            l0 = l0 * m
            l1 = l1 * m
            mx = jnp.maximum(l0, l1)
            lse = mx + jnp.log(jnp.exp(l0 - mx) + jnp.exp(l1 - mx))
            lt = jnp.where(tcls != 0, l1, l0)
            return lse - lt                 # (1, K)

        ce1 = bin_ce(pred[0:1], pred[1:2], tb[0:1])
        ce2 = bin_ce(pred[4:5], pred[5:6], tb[1:2])

        def smooth_l1(d):
            ad = jnp.abs(d)
            return jnp.where(ad < 1.0, 0.5 * d * d, ad - 0.5)

        sel1 = (tb[0:1] != 0).astype(jnp.float32)      # (1, K)
        sel2 = (tb[1:2] != 0).astype(jnp.float32)

        res1 = sel1 * (smooth_l1(pred[2:3] - jnp.sin(tres[0:1])) +
                       smooth_l1(pred[3:4] - jnp.cos(tres[0:1])))
        res2 = sel2 * (smooth_l1(pred[6:7] - jnp.sin(tres[1:2])) +
                       smooth_l1(pred[7:8] - jnp.cos(tres[1:2])))

        # per-batch partial sums: [ce1, ce2, res1, res2, cnt1, cnt2, 0, 0]
        partial = jnp.concatenate([
            jnp.sum(ce1, axis=-1, keepdims=True),
            jnp.sum(ce2, axis=-1, keepdims=True),
            jnp.sum(res1, axis=-1, keepdims=True),
            jnp.sum(res2, axis=-1, keepdims=True),
            jnp.sum(sel1, axis=-1, keepdims=True),
            jnp.sum(sel2, axis=-1, keepdims=True),
            jnp.zeros((1, 2), jnp.float32),
        ], axis=-1)                                    # (1, 8)
        out_ref[0] = partial


def bin_rot_loss(output_nchw, mask, ind, rotbin, rotres):
    """output_nchw: (B, 8, H, W); mask: (B, K); ind: (B, K) int32;
    rotbin: (B, K, 2) int; rotres: (B, K, 2) float."""
    B, C, H, W = output_nchw.shape
    assert C == 8, "rotation head must have 8 channels"
    K = ind.shape[1]
    HW = H * W

    # Native layout: just collapse H*W.  No transpose, no extra HBM traffic.
    feat = output_nchw.reshape(B, C, HW)

    # Tiny per-object tensors, laid out channel-major so the in-kernel math is
    # lane-vectorized along K (matches the (C, K) gathered prediction tile).
    ind3 = ind.astype(jnp.int32).reshape(B, K, 1)
    rotbin_t = jnp.transpose(rotbin.astype(jnp.int32), (0, 2, 1))    # (B, 2, K)
    rotres_t = jnp.transpose(rotres.astype(jnp.float32), (0, 2, 1))  # (B, 2, K)
    mask3 = mask.astype(jnp.float32).reshape(B, 1, K)

    # HW tile: full map if small, else a large lane-aligned tile (fewer grid
    # steps -> less per-step overhead; 8 x T_BLK f32 = 256 KiB double-buffered).
    T_BLK = HW if HW <= 8192 else 8192
    num_t = pl.cdiv(HW, T_BLK)

    grid_spec = pltpu.PrefetchScalarGridSpec(
        num_scalar_prefetch=0,
        grid=(B, num_t),
        in_specs=[
            pl.BlockSpec((1, C, T_BLK), lambda b, t: (b, 0, t)),   # feat tile
            pl.BlockSpec((1, K, 1), lambda b, t: (b, 0, 0)),       # ind
            pl.BlockSpec((1, 2, K), lambda b, t: (b, 0, 0)),       # rotbin
            pl.BlockSpec((1, 2, K), lambda b, t: (b, 0, 0)),       # rotres
            pl.BlockSpec((1, 1, K), lambda b, t: (b, 0, 0)),       # mask
        ],
        out_specs=pl.BlockSpec((1, 1, 8), lambda b, t: (b, 0, 0)),
        scratch_shapes=[pltpu.VMEM((C, K), jnp.float32)],          # gathered pred
    )

    cost = pl.CostEstimate(
        flops=int(2 * B * HW * C * K + 40 * B * K),
        transcendentals=int(8 * B * K),
        bytes_accessed=int(B * HW * C * 4 + B * K * 6 * 4 + B * 8 * 4),
    )

    partials = pl.pallas_call(
        functools.partial(_bin_rot_kernel, hw=HW, t_blk=T_BLK),
        out_shape=jax.ShapeDtypeStruct((B, 1, 8), jnp.float32),
        grid_spec=grid_spec,
        compiler_params=pltpu.CompilerParams(
            dimension_semantics=("parallel", "arbitrary")),
        cost_estimate=cost,
    )(feat, ind3, rotbin_t, rotres_t, mask3)

    totals = jnp.sum(partials.reshape(B, 8), axis=0)
    n = jnp.float32(B * K)
    loss_bin = (totals[0] + totals[1]) / n
    # PyTorch's `if nonzero-count > 0` branch: masked sums are already zero when
    # the count is zero, so dividing by max(count, 1) is identical.
    loss_res = (totals[2] / jnp.maximum(totals[4], 1.0) +
                totals[3] / jnp.maximum(totals[5], 1.0))
    return loss_bin + loss_res


def _reference_binrot_loss(output_nchw, mask, ind, rotbin, rotres):
    """Pure-JAX transcription of the PyTorch BinRotLoss forward."""
    B, C, H, W = output_nchw.shape
    feat = jnp.transpose(output_nchw.reshape(B, C, H * W), (0, 2, 1))
    pred = jnp.take_along_axis(feat, ind[..., None].astype(jnp.int32), axis=1)
    out = pred.reshape(-1, 8).astype(jnp.float32)
    tb = rotbin.reshape(-1, 2).astype(jnp.int32)
    tr = rotres.reshape(-1, 2).astype(jnp.float32)
    m = mask.reshape(-1, 1).astype(jnp.float32)

    def bin_ce(logits, t):
        logits = logits * m
        lse = jax.nn.logsumexp(logits, axis=-1)
        lt = jnp.take_along_axis(logits, t[:, None], axis=-1)[:, 0]
        return jnp.mean(lse - lt)

    loss_bin1 = bin_ce(out[:, 0:2], tb[:, 0])
    loss_bin2 = bin_ce(out[:, 4:6], tb[:, 1])

    def smooth_l1(a, b):
        d = a - b
        ad = jnp.abs(d)
        return jnp.where(ad < 1.0, 0.5 * d * d, ad - 0.5)

    sel1 = (tb[:, 0] != 0).astype(jnp.float32)
    c1 = jnp.maximum(sel1.sum(), 1.0)
    res1 = jnp.sum(sel1 * (smooth_l1(out[:, 2], jnp.sin(tr[:, 0])) +
                           smooth_l1(out[:, 3], jnp.cos(tr[:, 0])))) / c1
    sel2 = (tb[:, 1] != 0).astype(jnp.float32)
    c2 = jnp.maximum(sel2.sum(), 1.0)
    res2 = jnp.sum(sel2 * (smooth_l1(out[:, 6], jnp.sin(tr[:, 1])) +
                           smooth_l1(out[:, 7], jnp.cos(tr[:, 1])))) / c2
    return loss_bin1 + loss_bin2 + res1 + res2


if __name__ == "__main__":
    key = jax.random.PRNGKey(0)
    k1, k2, k3, k4, k5 = jax.random.split(key, 5)

    B, C, H, W, K = 2, 8, 16, 16, 8

    output = jax.random.normal(k1, (B, C, H, W), dtype=jnp.float32)
    mask = (jax.random.uniform(k2, (B, K)) > 0.3).astype(jnp.float32)
    ind = jax.random.randint(k3, (B, K), 0, H * W, dtype=jnp.int32)
    rotbin = jax.random.randint(k4, (B, K, 2), 0, 2, dtype=jnp.int32)
    rotres = jax.random.uniform(k5, (B, K, 2), minval=-3.14, maxval=3.14,
                                dtype=jnp.float32)

    loss = jax.block_until_ready(bin_rot_loss(output, mask, ind, rotbin, rotres))
    ref = jax.block_until_ready(_reference_binrot_loss(output, mask, ind, rotbin, rotres))

    assert jnp.abs(loss - ref) < 1e-4, (loss, ref)
    print("KERNEL_OK")
</pallas_src>

<mosaic_0001>
module attributes {stable_mosaic.version = 11 : i64} {
  func.func @_bin_rot_kernel(%arg0: i32, %arg1: i32, %arg2: memref<1x8x256xf32, #tpu.memory_space<vmem>>, %arg3: memref<1x8x1xi32, #tpu.memory_space<vmem>>, %arg4: memref<1x2x8xi32, #tpu.memory_space<vmem>>, %arg5: memref<1x2x8xf32, #tpu.memory_space<vmem>>, %arg6: memref<1x1x8xf32, #tpu.memory_space<vmem>>, %arg7: memref<1x1x8xf32, #tpu.memory_space<vmem>>, %arg8: memref<8x8xf32, #tpu.memory_space<vmem>>) attributes {dimension_semantics = [#tpu.dimension_semantics<parallel>, #tpu.dimension_semantics<arbitrary>], iteration_bounds = array<i64: 2, 1>, scalar_prefetch = 0 : i64, scratch_operands = 1 : i64, tpu.core_type = #tpu.core_type<tc>, window_params = [{transform_indices = @transform_0, window_bounds = array<i64: 1, 8, 256>}, {transform_indices = @transform_1, window_bounds = array<i64: 1, 8, 1>}, {transform_indices = @transform_2, window_bounds = array<i64: 1, 2, 8>}, {transform_indices = @transform_3, window_bounds = array<i64: 1, 2, 8>}, {transform_indices = @transform_4, window_bounds = array<i64: 1, 1, 8>}, {transform_indices = @transform_5, window_bounds = array<i64: 1, 1, 8>}]} {
    %c0_i32 = arith.constant 0 : i32
    %0 = arith.cmpi eq, %arg1, %c0_i32 : i32
    %1 = arith.extui %0 : i1 to i32
    %c0_i32_0 = arith.constant 0 : i32
    %2 = arith.cmpi ne, %1, %c0_i32_0 : i32
    scf.if %2 {
      %cst_12 = arith.constant 0.000000e+00 : f32
      %22 = vector.broadcast %cst_12 : f32 to vector<8x8xf32>
      %c0_13 = arith.constant 0 : index
      %c0_14 = arith.constant 0 : index
      %23 = vector.load %arg8[%c0_13, %c0_14] : memref<8x8xf32, #tpu.memory_space<vmem>>, vector<8x8xf32>
      tpu.vector_store %arg8[%c0_13, %c0_14], %22 {strides = array<i32>} : memref<8x8xf32, #tpu.memory_space<vmem>>, vector<8x8xf32>,
    } else {
    }
    %c0 = arith.constant 0 : index
    %c0_1 = arith.constant 0 : index
    %c0_2 = arith.constant 0 : index
    %3 = vector.load %arg2[%c0, %c0_1, %c0_2] : memref<1x8x256xf32, #tpu.memory_space<vmem>>, vector<1x8x256xf32>
    %4 = vector.shape_cast %3 : vector<1x8x256xf32> to vector<8x256xf32>
    %c0_3 = arith.constant 0 : index
    %c0_4 = arith.constant 0 : index
    %c0_5 = arith.constant 0 : index
    %5 = vector.load %arg3[%c0_3, %c0_4, %c0_5] : memref<1x8x1xi32, #tpu.memory_space<vmem>>, vector<1x8x1xi32>
    %6 = vector.shape_cast %5 : vector<1x8x1xi32> to vector<8x1xi32>
    %7 = tpu.iota {dimensions = array<i32: 1>} : vector<8x256xi32>
    %c256_i32 = arith.constant 256 : i32
    %8 = arith.muli %arg1, %c256_i32 : i32
    %9 = vector.broadcast %8 : i32 to vector<8x256xi32>
    %10 = arith.addi %7, %9 : vector<8x256xi32>
    %11 = vector.broadcast %6 : vector<8x1xi32> to vector<8x256xi32>
    %12 = arith.cmpi eq, %10, %11 : vector<8x256xi32>
    %13 = arith.extui %12 : vector<8x256xi1> to vector<8x256xi32>
    %14 = arith.sitofp %13 : vector<8x256xi32> to vector<8x256xf32>
    %c0_6 = arith.constant 0 : index
    %c0_7 = arith.constant 0 : index
    %15 = vector.load %arg8[%c0_6, %c0_7] : memref<8x8xf32, #tpu.memory_space<vmem>>, vector<8x8xf32>
    %cst = arith.constant dense<0.000000e+00> : vector<8x8xf32>
    %16 = tpu.matmul %4, %14, %cst {dimension_numbers = #tpu.dot_dimension_numbers<[1], [1], [0], [0], [0, 0, 1, 0], [], []>, precision = #tpu.contract_precision<fp32>} : vector<8x256xf32>, vector<8x256xf32>, vector<8x8xf32> -> vector<8x8xf32>
    %17 = arith.addf %15, %16 : vector<8x8xf32>
    %c0_8 = arith.constant 0 : index
    %c0_9 = arith.constant 0 : index
    %18 = vector.load %arg8[%c0_8, %c0_9] : memref<8x8xf32, #tpu.memory_space<vmem>>, vector<8x8xf32>
    tpu.vector_store %arg8[%c0_8, %c0_9], %17 {strides = array<i32>} : memref<8x8xf32, #tpu.memory_space<vmem>>, vector<8x8xf32>,
    %c0_i32_10 = arith.constant 0 : i32
    %19 = arith.cmpi eq, %arg1, %c0_i32_10 : i32
    %20 = arith.extui %19 : i1 to i32
    %c0_i32_11 = arith.constant 0 : i32
    %21 = arith.cmpi ne, %20, %c0_i32_11 : i32
    scf.if %21 {
      %c0_12 = arith.constant 0 : index
      %c0_13 = arith.constant 0 : index
      %22 = vector.load %arg8[%c0_12, %c0_13] : memref<8x8xf32, #tpu.memory_space<vmem>>, vector<8x8xf32>
      %c0_14 = arith.constant 0 : index
      %c0_15 = arith.constant 0 : index
      %c0_16 = arith.constant 0 : index
      %23 = vector.load %arg6[%c0_14, %c0_15, %c0_16] : memref<1x1x8xf32, #tpu.memory_space<vmem>>, vector<1x1x8xf32>
      %24 = vector.shape_cast %23 : vector<1x1x8xf32> to vector<1x8xf32>
      %c0_17 = arith.constant 0 : index
      %c0_18 = arith.constant 0 : index
      %c0_19 = arith.constant 0 : index
      %25 = vector.load %arg4[%c0_17, %c0_18, %c0_19] : memref<1x2x8xi32, #tpu.memory_space<vmem>>, vector<1x2x8xi32>
      %26 = vector.shape_cast %25 : vector<1x2x8xi32> to vector<2x8xi32>
      %c0_20 = arith.constant 0 : index
      %c0_21 = arith.constant 0 : index
      %c0_22 = arith.constant 0 : index
      %27 = vector.load %arg5[%c0_20, %c0_21, %c0_22] : memref<1x2x8xf32, #tpu.memory_space<vmem>>, vector<1x2x8xf32>
      %28 = vector.shape_cast %27 : vector<1x2x8xf32> to vector<2x8xf32>
      %29 = vector.extract_strided_slice %22 {offsets = [0, 0], sizes = [1, 8], strides = [1, 1]} : vector<8x8xf32> to vector<1x8xf32>
      %30 = vector.extract_strided_slice %22 {offsets = [1, 0], sizes = [1, 8], strides = [1, 1]} : vector<8x8xf32> to vector<1x8xf32>
      %31 = vector.extract_strided_slice %26 {offsets = [0, 0], sizes = [1, 8], strides = [1, 1]} : vector<2x8xi32> to vector<1x8xi32>
      %32 = arith.mulf %29, %24 : vector<1x8xf32>
      %33 = arith.mulf %30, %24 : vector<1x8xf32>
      %34 = arith.maximumf %32, %33 : vector<1x8xf32>
      %35 = arith.subf %32, %34 : vector<1x8xf32>
      %36 = math.exp %35 : vector<1x8xf32>
      %37 = arith.subf %33, %34 : vector<1x8xf32>
      %38 = math.exp %37 : vector<1x8xf32>
      %39 = arith.addf %36, %38 : vector<1x8xf32>
      %40 = math.log %39 : vector<1x8xf32>
      %41 = arith.addf %34, %40 : vector<1x8xf32>
      %c0_i32_23 = arith.constant 0 : i32
      %42 = vector.broadcast %c0_i32_23 : i32 to vector<1x8xi32>
      %43 = arith.cmpi ne, %31, %42 : vector<1x8xi32>
      %44 = arith.select %43, %33, %32 : vector<1x8xi1>, vector<1x8xf32>
      %45 = arith.subf %41, %44 : vector<1x8xf32>
      %46 = vector.extract_strided_slice %22 {offsets = [4, 0], sizes = [1, 8], strides = [1, 1]} : vector<8x8xf32> to vector<1x8xf32>
      %47 = vector.extract_strided_slice %22 {offsets = [5, 0], sizes = [1, 8], strides = [1, 1]} : vector<8x8xf32> to vector<1x8xf32>
      %48 = vector.extract_strided_slice %26 {offsets = [1, 0], sizes = [1, 8], strides = [1, 1]} : vector<2x8xi32> to vector<1x8xi32>
      %49 = arith.mulf %46, %24 : vector<1x8xf32>
      %50 = arith.mulf %47, %24 : vector<1x8xf32>
      %51 = arith.maximumf %49, %50 : vector<1x8xf32>
      %52 = arith.subf %49, %51 : vector<1x8xf32>
      %53 = math.exp %52 : vector<1x8xf32>
      %54 = arith.subf %50, %51 : vector<1x8xf32>
      %55 = math.exp %54 : vector<1x8xf32>
      %56 = arith.addf %53, %55 : vector<1x8xf32>
      %57 = math.log %56 : vector<1x8xf32>
      %58 = arith.addf %51, %57 : vector<1x8xf32>
      %c0_i32_24 = arith.constant 0 : i32
      %59 = vector.broadcast %c0_i32_24 : i32 to vector<1x8xi32>
      %60 = arith.cmpi ne, %48, %59 : vector<1x8xi32>
      %61 = arith.select %60, %50, %49 : vector<1x8xi1>, vector<1x8xf32>
      %62 = arith.subf %58, %61 : vector<1x8xf32>
      %63 = vector.extract_strided_slice %26 {offsets = [0, 0], sizes = [1, 8], strides = [1, 1]} : vector<2x8xi32> to vector<1x8xi32>
      %c0_i32_25 = arith.constant 0 : i32
      %64 = vector.broadcast %c0_i32_25 : i32 to vector<1x8xi32>
      %65 = arith.cmpi ne, %63, %64 : vector<1x8xi32>
      %66 = arith.extui %65 : vector<1x8xi1> to vector<1x8xi32>
      %67 = arith.sitofp %66 : vector<1x8xi32> to vector<1x8xf32>
      %68 = vector.extract_strided_slice %26 {offsets = [1, 0], sizes = [1, 8], strides = [1, 1]} : vector<2x8xi32> to vector<1x8xi32>
      %c0_i32_26 = arith.constant 0 : i32
      %69 = vector.broadcast %c0_i32_26 : i32 to vector<1x8xi32>
      %70 = arith.cmpi ne, %68, %69 : vector<1x8xi32>
      %71 = arith.extui %70 : vector<1x8xi1> to vector<1x8xi32>
      %72 = arith.sitofp %71 : vector<1x8xi32> to vector<1x8xf32>
      %73 = vector.extract_strided_slice %22 {offsets = [2, 0], sizes = [1, 8], strides = [1, 1]} : vector<8x8xf32> to vector<1x8xf32>
      %74 = vector.extract_strided_slice %28 {offsets = [0, 0], sizes = [1, 8], strides = [1, 1]} : vector<2x8xf32> to vector<1x8xf32>
      %75 = math.sin %74 : vector<1x8xf32>
      %76 = arith.subf %73, %75 : vector<1x8xf32>
      %77 = math.absf %76 : vector<1x8xf32>
      %cst_27 = arith.constant 1.000000e+00 : f32
      %78 = vector.broadcast %cst_27 : f32 to vector<1x8xf32>
      %79 = arith.cmpf olt, %77, %78 : vector<1x8xf32>
      %cst_28 = arith.constant 5.000000e-01 : f32
      %80 = vector.broadcast %cst_28 : f32 to vector<1x8xf32>
      %81 = arith.mulf %80, %76 : vector<1x8xf32>
      %82 = arith.mulf %81, %76 : vector<1x8xf32>
      %cst_29 = arith.constant 5.000000e-01 : f32
      %83 = vector.broadcast %cst_29 : f32 to vector<1x8xf32>
      %84 = arith.subf %77, %83 : vector<1x8xf32>
      %85 = arith.select %79, %82, %84 : vector<1x8xi1>, vector<1x8xf32>
      %86 = vector.extract_strided_slice %22 {offsets = [3, 0], sizes = [1, 8], strides = [1, 1]} : vector<8x8xf32> to vector<1x8xf32>
      %87 = vector.extract_strided_slice %28 {offsets = [0, 0], sizes = [1, 8], strides = [1, 1]} : vector<2x8xf32> to vector<1x8xf32>
      %88 = math.cos %87 : vector<1x8xf32>
      %89 = arith.subf %86, %88 : vector<1x8xf32>
      %90 = math.absf %89 : vector<1x8xf32>
      %cst_30 = arith.constant 1.000000e+00 : f32
      %91 = vector.broadcast %cst_30 : f32 to vector<1x8xf32>
      %92 = arith.cmpf olt, %90, %91 : vector<1x8xf32>
      %cst_31 = arith.constant 5.000000e-01 : f32
      %93 = vector.broadcast %cst_31 : f32 to vector<1x8xf32>
      %94 = arith.mulf %93, %89 : vector<1x8xf32>
      %95 = arith.mulf %94, %89 : vector<1x8xf32>
      %cst_32 = arith.constant 5.000000e-01 : f32
      %96 = vector.broadcast %cst_32 : f32 to vector<1x8xf32>
      %97 = arith.subf %90, %96 : vector<1x8xf32>
      %98 = arith.select %92, %95, %97 : vector<1x8xi1>, vector<1x8xf32>
      %99 = arith.addf %85, %98 : vector<1x8xf32>
      %100 = arith.mulf %67, %99 : vector<1x8xf32>
      %101 = vector.extract_strided_slice %22 {offsets = [6, 0], sizes = [1, 8], strides = [1, 1]} : vector<8x8xf32> to vector<1x8xf32>
      %102 = vector.extract_strided_slice %28 {offsets = [1, 0], sizes = [1, 8], strides = [1, 1]} : vector<2x8xf32> to vector<1x8xf32>
      %103 = math.sin %102 : vector<1x8xf32>
      %104 = arith.subf %101, %103 : vector<1x8xf32>
      %105 = math.absf %104 : vector<1x8xf32>
      %cst_33 = arith.constant 1.000000e+00 : f32
      %106 = vector.broadcast %cst_33 : f32 to vector<1x8xf32>
      %107 = arith.cmpf olt, %105, %106 : vector<1x8xf32>
      %cst_34 = arith.constant 5.000000e-01 : f32
      %108 = vector.broadcast %cst_34 : f32 to vector<1x8xf32>
      %109 = arith.mulf %108, %104 : vector<1x8xf32>
      %110 = arith.mulf %109, %104 : vector<1x8xf32>
      %cst_35 = arith.constant 5.000000e-01 : f32
      %111 = vector.broadcast %cst_35 : f32 to vector<1x8xf32>
      %112 = arith.subf %105, %111 : vector<1x8xf32>
      %113 = arith.select %107, %110, %112 : vector<1x8xi1>, vector<1x8xf32>
      %114 = vector.extract_strided_slice %22 {offsets = [7, 0], sizes = [1, 8], strides = [1, 1]} : vector<8x8xf32> to vector<1x8xf32>
      %115 = vector.extract_strided_slice %28 {offsets = [1, 0], sizes = [1, 8], strides = [1, 1]} : vector<2x8xf32> to vector<1x8xf32>
      %116 = math.cos %115 : vector<1x8xf32>
      %117 = arith.subf %114, %116 : vector<1x8xf32>
      %118 = math.absf %117 : vector<1x8xf32>
      %cst_36 = arith.constant 1.000000e+00 : f32
      %119 = vector.broadcast %cst_36 : f32 to vector<1x8xf32>
      %120 = arith.cmpf olt, %118, %119 : vector<1x8xf32>
      %cst_37 = arith.constant 5.000000e-01 : f32
      %121 = vector.broadcast %cst_37 : f32 to vector<1x8xf32>
      %122 = arith.mulf %121, %117 : vector<1x8xf32>
      %123 = arith.mulf %122, %117 : vector<1x8xf32>
      %cst_38 = arith.constant 5.000000e-01 : f32
      %124 = vector.broadcast %cst_38 : f32 to vector<1x8xf32>
      %125 = arith.subf %118, %124 : vector<1x8xf32>
      %126 = arith.select %120, %123, %125 : vector<1x8xi1>, vector<1x8xf32>
      %127 = arith.addf %113, %126 : vector<1x8xf32>
      %128 = arith.mulf %72, %127 : vector<1x8xf32>
      %cst_39 = arith.constant dense<0.000000e+00> : vector<1xf32>
      %129 = vector.multi_reduction <add>, %45, %cst_39 [1] : vector<1x8xf32> to vector<1xf32>
      %130 = vector.shape_cast %129 : vector<1xf32> to vector<1x1xf32>
      %cst_40 = arith.constant dense<0.000000e+00> : vector<1xf32>
      %131 = vector.multi_reduction <add>, %62, %cst_40 [1] : vector<1x8xf32> to vector<1xf32>
      %132 = vector.shape_cast %131 : vector<1xf32> to vector<1x1xf32>
      %cst_41 = arith.constant dense<0.000000e+00> : vector<1xf32>
      %133 = vector.multi_reduction <add>, %100, %cst_41 [1] : vector<1x8xf32> to vector<1xf32>
      %134 = vector.shape_cast %133 : vector<1xf32> to vector<1x1xf32>
      %cst_42 = arith.constant dense<0.000000e+00> : vector<1xf32>
      %135 = vector.multi_reduction <add>, %128, %cst_42 [1] : vector<1x8xf32> to vector<1xf32>
      %136 = vector.shape_cast %135 : vector<1xf32> to vector<1x1xf32>
      %cst_43 = arith.constant dense<0.000000e+00> : vector<1xf32>
      %137 = vector.multi_reduction <add>, %67, %cst_43 [1] : vector<1x8xf32> to vector<1xf32>
      %138 = vector.shape_cast %137 : vector<1xf32> to vector<1x1xf32>
      %cst_44 = arith.constant dense<0.000000e+00> : vector<1xf32>
      %139 = vector.multi_reduction <add>, %72, %cst_44 [1] : vector<1x8xf32> to vector<1xf32>
      %140 = vector.shape_cast %139 : vector<1xf32> to vector<1x1xf32>
      %cst_45 = arith.constant 0.000000e+00 : f32
      %141 = vector.broadcast %cst_45 : f32 to vector<1x2xf32>
      %142 = tpu.concatenate %130, %132, %134, %136, %138, %140, %141 in 1 : vector<1x1xf32>, vector<1x1xf32>, vector<1x1xf32>, vector<1x1xf32>, vector<1x1xf32>, vector<1x1xf32>, vector<1x2xf32> -> vector<1x8xf32>
      %c0_46 = arith.constant 0 : index
      %c0_47 = arith.constant 0 : index
      %c0_48 = arith.constant 0 : index
      %143 = vector.load %arg7[%c0_46, %c0_47, %c0_48] : memref<1x1x8xf32, #tpu.memory_space<vmem>>, vector<1x1x8xf32>
      %144 = vector.shape_cast %143 : vector<1x1x8xf32> to vector<1x8xf32>
      %145 = vector.shape_cast %142 : vector<1x8xf32> to vector<1x1x8xf32>
      tpu.vector_store %arg7[%c0_46, %c0_47, %c0_48], %145 {strides = array<i32>} : memref<1x1x8xf32, #tpu.memory_space<vmem>>, vector<1x1x8xf32>,
    } else {
    }
    return
  }
  func.func @transform_0(%arg0: i32, %arg1: i32) -> (i32, i32, i32) {
    %c0_i32 = arith.constant 0 : i32
    %c0_i32_0 = arith.constant 0 : i32
    return %arg0, %c0_i32, %arg1 : i32, i32, i32
  }
  func.func @transform_1(%arg0: i32, %arg1: i32) -> (i32, i32, i32) {
    %c0_i32 = arith.constant 0 : i32
    %c0_i32_0 = arith.constant 0 : i32
    %c0_i32_1 = arith.constant 0 : i32
    return %arg0, %c0_i32, %c0_i32_0 : i32, i32, i32
  }
  func.func @transform_2(%arg0: i32, %arg1: i32) -> (i32, i32, i32) {
    %c0_i32 = arith.constant 0 : i32
    %c0_i32_0 = arith.constant 0 : i32
    %c0_i32_1 = arith.constant 0 : i32
    return %arg0, %c0_i32, %c0_i32_0 : i32, i32, i32
  }
  func.func @transform_3(%arg0: i32, %arg1: i32) -> (i32, i32, i32) {
    %c0_i32 = arith.constant 0 : i32
    %c0_i32_0 = arith.constant 0 : i32
    %c0_i32_1 = arith.constant 0 : i32
    return %arg0, %c0_i32, %c0_i32_0 : i32, i32, i32
  }
  func.func @transform_4(%arg0: i32, %arg1: i32) -> (i32, i32, i32) {
    %c0_i32 = arith.constant 0 : i32
    %c0_i32_0 = arith.constant 0 : i32
    %c0_i32_1 = arith.constant 0 : i32
    return %arg0, %c0_i32, %c0_i32_0 : i32, i32, i32
  }
  func.func @transform_5(%arg0: i32, %arg1: i32) -> (i32, i32, i32) {
    %c0_i32 = arith.constant 0 : i32
    %c0_i32_0 = arith.constant 0 : i32
    %c0_i32_1 = arith.constant 0 : i32
    return %arg0, %c0_i32, %c0_i32_0 : i32, i32, i32
  }
}

</mosaic_0001>

<llo_original>
// kernel: tpu_custom_call.1
$region0: #{tpu_custom_call.1}
  #allocation0 [shape = 'u32[]', space=smem, size = 0x4, offset = 0x4, fixed_abs, tag = 'smem constant byte address 0x4 - core index']
  #allocation1 [shape = 'u32[144,128]{1,0:T(1,128)}', space=vmem, size = 0x12000, scoped, tag = 'internal scratch']
  #allocation2 [shape = 'f32[8,8]{1,0:T(8,128)}', space=vmem, size = 0x1000, scoped, tag = 'scratch operand']
  %s0 = inlined_call_operand.hbm [shape: f32[2,8,256], index: 0, kind: input, shape index: {}]
  %s1 = inlined_call_operand.vmem [shape: s32[2,8,1], index: 1, kind: input, shape index: {}]
  %s2 = inlined_call_operand.vmem [shape: s32[2,2,8], index: 2, kind: input, shape index: {}]
  %s3 = inlined_call_operand.vmem [shape: f32[2,2,8], index: 3, kind: input, shape index: {}]
  %s4 = inlined_call_operand.vmem [shape: f32[2,1,8], index: 4, kind: input, shape index: {}]
  %s5 = inlined_call_operand.hbm [shape: f32[2,1,8], index: 5, kind: output, shape index: {}]
  %s6 = sld [smem:[#allocation0]]
  $region65: #{tpu_custom_call.1} parent=0
    _
  %s8 = ssub.s32 1, %s6
  %s9 = scalar_select 0, %s8, %s6
  $region1: #{tpu_custom_call.1} parent=0
    #allocation3 [shape = 'u8[16384]{0}', space=vmem, size = 0x4000, scoped, tag = 'input window, operand 0']
    #allocation4 [shape = 's32[2]{0}', space=sflag, size = 0x8, scoped, tag = 'scoped memory for tpu_custom_call.1']
    #allocation5 [shape = 's32[2]{0}', space=sflag, size = 0x8, scoped, tag = 'scoped memory for tpu_custom_call.1']
    #allocation6 [shape = 'u8[1024]{0}', space=vmem, size = 0x400, scoped, tag = 'output window, operand 0']
    %10 = vsyncpa [#allocation4], 0
    %s11 = scalar_lea.sflag [#allocation4], 1
    %12 = vsyncpa %s11, 0
    %13 = vsyncpa [#allocation5], 0
    %s14 = scalar_lea.sflag [#allocation5], 1
    %15 = vsyncpa %s14, 0
    loop: start=0, step=1, limit=4
    $region2: #{tpu_custom_call.1} parent=1 // loop_pre_header
      _
    $region3: #{tpu_custom_call.1} parent=1 // loop_header
      %s17 = sphi 0, %s21
      %p18 = scmp.ge.s32.totalorder %s17, 4
      %s24 = sphi 0, %s36
      %s25 = sphi 0, %s32
      %s26 = sphi 0, %s24
      %s27 = sphi 0, %s25
      %s28 = sphi 0, %s26
      %s29 = sphi 0, %s27
      %s41 = sphi 0, %s43
      %s44 = sphi 0, %s41
      %s45 = sphi 0, %s44
      %s61 = sphi 0, %s45
      %s67 = sphi 0, %s69
      %s70 = sphi 0, %s67
      %s71 = sphi 0, %s70
      %s87 = sphi 0, %s71
      %s93 = sphi 0, %s95
      %s96 = sphi 0, %s93
      %s97 = sphi 0, %s96
      %s113 = sphi 0, %s97
      %s119 = sphi 0, %s121
      %s122 = sphi 0, %s119
      %s123 = sphi 0, %s122
      %s139 = sphi 0, %s123
      %s145 = sphi 0, %s147
      %s148 = sphi 0, %s145
      %s149 = sphi 0, %s148
      %s165 = sphi 0, %s149
      %s171 = sphi 0, %s173
      %s174 = sphi 0, %s171
      %s175 = sphi 0, %s174
      %s191 = sphi 0, %s175
    $region4: #{tpu_custom_call.1} parent=1 // loop_header_branch
      %20 = sbr.rel (%p18) target = $region8
    $region5: #{tpu_custom_call.1} parent=1 // loop_body
      %s22 = ssub.s32 %s17, 1
      %s23 = ssub.s32 %s17, 2
      %s30 = sadd.s32 1, %s25
      %p31 = scmp.ge.s32.totalorder %s30, 1
      %s32 = scalar_select %p31, 0, %s30
      %s33 = sadd.s32 1, %s24
      %s34 = scalar_select %p31, %s33, %s24
      %p35 = scmp.ge.s32.totalorder %s34, 2
      %s36 = scalar_select %p35, 0, %s34
      %s37 = ssub.s32 %s24, %s36
      %s38 = ssub.s32 %s25, %s32
      %s39 = sor.u32 %s37, %s38
      %p40 = scmp.eq.s32.totalorder %s39, 0
      %s42 = sadd.s32 %s41, 1
      %s43 = scalar_select %p40, %s41, %s42
      %p46 = pneg %p40
      %p47 = scmp.eq.s32.totalorder %s17, 1
      %p48 = por %p46, %p47
      %p49 = scmp.ne.s32.totalorder %s41, %s44
      %p50 = scmp.eq.s32.totalorder %s17, 0
      %p51 = por %p49, %p50
      %p52 = scmp.ne.s32.totalorder %s41, %s44
      %p53 = scmp.eq.s32.totalorder %s22, 1
      %p54 = por %p52, %p53
      %p55 = scmp.ne.s32.totalorder %s44, %s45
      %p56 = scmp.eq.s32.totalorder %s22, 0
      %p57 = por %p55, %p56
      %p58 = scmp.ne.s32.totalorder %s44, %s45
      %p59 = scmp.eq.s32.totalorder %s23, 1
      %p60 = por %p58, %p59
      %p62 = scmp.ne.s32.totalorder %s45, %s61
      %p63 = scmp.eq.s32.totalorder %s23, 0
      %p64 = por %p62, %p63
      %s65 = ssub.s32 %s24, %s36
      %p66 = scmp.eq.s32.totalorder %s65, 0
      %s68 = sadd.s32 %s67, 1
      %s69 = scalar_select %p66, %s67, %s68
      %p72 = pneg %p66
      %p73 = scmp.eq.s32.totalorder %s17, 1
      %p74 = por %p72, %p73
      %p75 = scmp.ne.s32.totalorder %s67, %s70
      %p76 = scmp.eq.s32.totalorder %s17, 0
      %p77 = por %p75, %p76
      %p78 = scmp.ne.s32.totalorder %s67, %s70
      %p79 = scmp.eq.s32.totalorder %s22, 1
      %p80 = por %p78, %p79
      %p81 = scmp.ne.s32.totalorder %s70, %s71
      %p82 = scmp.eq.s32.totalorder %s22, 0
      %p83 = por %p81, %p82
      %p84 = scmp.ne.s32.totalorder %s70, %s71
      %p85 = scmp.eq.s32.totalorder %s23, 1
      %p86 = por %p84, %p85
      %p88 = scmp.ne.s32.totalorder %s71, %s87
      %p89 = scmp.eq.s32.totalorder %s23, 0
      %p90 = por %p88, %p89
      %s91 = ssub.s32 %s24, %s36
      %p92 = scmp.eq.s32.totalorder %s91, 0
      %s94 = sadd.s32 %s93, 1
      %s95 = scalar_select %p92, %s93, %s94
      %p98 = pneg %p92
      %p99 = scmp.eq.s32.totalorder %s17, 1
      %p100 = por %p98, %p99
      %p101 = scmp.ne.s32.totalorder %s93, %s96
      %p102 = scmp.eq.s32.totalorder %s17, 0
      %p103 = por %p101, %p102
      %p104 = scmp.ne.s32.totalorder %s93, %s96
      %p105 = scmp.eq.s32.totalorder %s22, 1
      %p106 = por %p104, %p105
      %p107 = scmp.ne.s32.totalorder %s96, %s97
      %p108 = scmp.eq.s32.totalorder %s22, 0
      %p109 = por %p107, %p108
      %p110 = scmp.ne.s32.totalorder %s96, %s97
      %p111 = scmp.eq.s32.totalorder %s23, 1
      %p112 = por %p110, %p111
      %p114 = scmp.ne.s32.totalorder %s97, %s113
      %p115 = scmp.eq.s32.totalorder %s23, 0
      %p116 = por %p114, %p115
      %s117 = ssub.s32 %s24, %s36
      %p118 = scmp.eq.s32.totalorder %s117, 0
      %s120 = sadd.s32 %s119, 1
      %s121 = scalar_select %p118, %s119, %s120
      %p124 = pneg %p118
      %p125 = scmp.eq.s32.totalorder %s17, 1
      %p126 = por %p124, %p125
      %p127 = scmp.ne.s32.totalorder %s119, %s122
      %p128 = scmp.eq.s32.totalorder %s17, 0
      %p129 = por %p127, %p128
      %p130 = scmp.ne.s32.totalorder %s119, %s122
      %p131 = scmp.eq.s32.totalorder %s22, 1
      %p132 = por %p130, %p131
      %p133 = scmp.ne.s32.totalorder %s122, %s123
      %p134 = scmp.eq.s32.totalorder %s22, 0
      %p135 = por %p133, %p134
      %p136 = scmp.ne.s32.totalorder %s122, %s123
      %p137 = scmp.eq.s32.totalorder %s23, 1
      %p138 = por %p136, %p137
      %p140 = scmp.ne.s32.totalorder %s123, %s139
      %p141 = scmp.eq.s32.totalorder %s23, 0
      %p142 = por %p140, %p141
      %s143 = ssub.s32 %s24, %s36
      %p144 = scmp.eq.s32.totalorder %s143, 0
      %s146 = sadd.s32 %s145, 1
      %s147 = scalar_select %p144, %s145, %s146
      %p150 = pneg %p144
      %p151 = scmp.eq.s32.totalorder %s17, 1
      %p152 = por %p150, %p151
      %p153 = scmp.ne.s32.totalorder %s145, %s148
      %p154 = scmp.eq.s32.totalorder %s17, 0
      %p155 = por %p153, %p154
      %p156 = scmp.ne.s32.totalorder %s145, %s148
      %p157 = scmp.eq.s32.totalorder %s22, 1
      %p158 = por %p156, %p157
      %p159 = scmp.ne.s32.totalorder %s148, %s149
      %p160 = scmp.eq.s32.totalorder %s22, 0
      %p161 = por %p159, %p160
      %p162 = scmp.ne.s32.totalorder %s148, %s149
      %p163 = scmp.eq.s32.totalorder %s23, 1
      %p164 = por %p162, %p163
      %p166 = scmp.ne.s32.totalorder %s149, %s165
      %p167 = scmp.eq.s32.totalorder %s23, 0
      %p168 = por %p166, %p167
      %s169 = ssub.s32 %s24, %s36
      %p170 = scmp.eq.s32.totalorder %s169, 0
      %s172 = sadd.s32 %s171, 1
      %s173 = scalar_select %p170, %s171, %s172
      %p176 = pneg %p170
      %p177 = scmp.eq.s32.totalorder %s17, 1
      %p178 = por %p176, %p177
      %p179 = scmp.ne.s32.totalorder %s171, %s174
      %p180 = scmp.eq.s32.totalorder %s17, 0
      %p181 = por %p179, %p180
      %p182 = scmp.ne.s32.totalorder %s171, %s174
      %p183 = scmp.eq.s32.totalorder %s22, 1
      %p184 = por %p182, %p183
      %p185 = scmp.ne.s32.totalorder %s174, %s175
      %p186 = scmp.eq.s32.totalorder %s22, 0
      %p187 = por %p185, %p186
      %p188 = scmp.ne.s32.totalorder %s174, %s175
      %p189 = scmp.eq.s32.totalorder %s23, 1
      %p190 = por %p188, %p189
      %p192 = scmp.ne.s32.totalorder %s175, %s191
      %p193 = scmp.eq.s32.totalorder %s23, 0
      %p194 = por %p192, %p193
      %p195 = scmp.le.s32.totalorder 1, %s17
      %p196 = scmp.lt.s32.totalorder %s17, 3
      %p197 = pnand %p195, %p196
      %p198 = pneg %p197
      // Predicated region
      $region9: #{tpu_custom_call.1} parent=5 // pred_check
        _
      $region10: #{tpu_custom_call.1} parent=5 // pred_check_branch
        %200 = sbr.rel (%p197) target = $region12
      $region11: #{tpu_custom_call.1} parent=5 // pred_region
        %s201 = ssub.s32 %s17, 1
      $region12: #{tpu_custom_call.1} parent=5 // pred_fallthru
        _
      %p202 = scmp.lt.s32.totalorder %s17, 2
      // Predicated region
      $region13: #{tpu_custom_call.1} parent=5 // pred_check
        %p203 = pneg %p202
      $region14: #{tpu_custom_call.1} parent=5 // pred_check_branch
        %205 = sbr.rel (%p203) target = $region16
      $region15: #{tpu_custom_call.1} parent=5 // pred_region
        // Predicated region
        $region17: #{tpu_custom_call.1} parent=15 // pred_check
          %p206 = pneg %p51
        $region18: #{tpu_custom_call.1} parent=15 // pred_check_branch
          %208 = sbr.rel (%p206) target = $region20
        $region19: #{tpu_custom_call.1} parent=15 // pred_region
          %s209 = sand.u32 %s41, 1
          %s210 = scalar_lea.sflag [#allocation4], %s209
          %s211 = sand.u32 %s41, 1
          %s212 = smul.addr %s211, 16
          %s213 = scalar_lea.vmem [#allocation3], %s212
          %s214 = smul.u32 2, %s25
          %s216 = ssub.s32 256, 256
          %217 = vsyncadd %s210, %s216
          %s218 = smul.addr %s24, 2
          %s219 = sadd.s32 %s214, %s218
          %s220 = smul.addr %s219, 128
          %s221 = scalar_lea.hbm %s0, %s220
          %s223 = sshll.u32 %s213, 4
          %s224 = int_to_ptr.vmem [resolvable:$true] %s223
          %226 = dma.hbm_to_vmem [thread:$0]  %s221, 256, %s224, %s210
        $region20: #{tpu_custom_call.1} parent=15 // pred_fallthru
          _
        // Predicated region
        $region21: #{tpu_custom_call.1} parent=15 // pred_check
          %p227 = pneg %p77
        $region22: #{tpu_custom_call.1} parent=15 // pred_check_branch
          %229 = sbr.rel (%p227) target = $region24
        $region23: #{tpu_custom_call.1} parent=15 // pred_region
          %p230 = scmp.lt.s32.totalorder %s24, 1
          %s231 = scalar_select %p230, %s24, 1
          %s232 = smul.addr %s231, 8
          %s233 = scalar_lea.vmem %s1, %s232
        $region24: #{tpu_custom_call.1} parent=15 // pred_fallthru
          _
        // Predicated region
        $region25: #{tpu_custom_call.1} parent=15 // pred_check
          %p234 = pneg %p103
        $region26: #{tpu_custom_call.1} parent=15 // pred_check_branch
          %236 = sbr.rel (%p234) target = $region28
        $region27: #{tpu_custom_call.1} parent=15 // pred_region
          %p237 = scmp.lt.s32.totalorder %s24, 1
          %s238 = scalar_select %p237, %s24, 1
          %s239 = smul.addr %s238, 2
          %s240 = scalar_lea.vmem %s2, %s239
        $region28: #{tpu_custom_call.1} parent=15 // pred_fallthru
          _
        // Predicated region
        $region29: #{tpu_custom_call.1} parent=15 // pred_check
          %p241 = pneg %p129
        $region30: #{tpu_custom_call.1} parent=15 // pred_check_branch
          %243 = sbr.rel (%p241) target = $region32
        $region31: #{tpu_custom_call.1} parent=15 // pred_region
          %p244 = scmp.lt.s32.totalorder %s24, 1
          %s245 = scalar_select %p244, %s24, 1
          %s246 = smul.addr %s245, 2
          %s247 = scalar_lea.vmem %s3, %s246
        $region32: #{tpu_custom_call.1} parent=15 // pred_fallthru
          _
        // Predicated region
        $region33: #{tpu_custom_call.1} parent=15 // pred_check
          %p248 = pneg %p155
        $region34: #{tpu_custom_call.1} parent=15 // pred_check_branch
          %250 = sbr.rel (%p248) target = $region36
        $region35: #{tpu_custom_call.1} parent=15 // pred_region
          %p251 = scmp.lt.s32.totalorder %s24, 1
          %s252 = scalar_select %p251, %s24, 1
          %s253 = scalar_lea.vmem %s4, %s252
        $region36: #{tpu_custom_call.1} parent=15 // pred_fallthru
          _
      $region16: #{tpu_custom_call.1} parent=5 // pred_fallthru
        _
      %p254 = scmp.le.s32.totalorder 1, %s17
      %p255 = scmp.lt.s32.totalorder %s17, 3
      %p256 = pnand %p254, %p255
      %p257 = pneg %p256
      // Predicated region
      $region37: #{tpu_custom_call.1} parent=5 // pred_check
        _
      $region38: #{tpu_custom_call.1} parent=5 // pred_check_branch
        %259 = sbr.rel (%p256) target = $region40
      $region39: #{tpu_custom_call.1} parent=5 // pred_region
        %s260 = ssub.s32 %s17, 1
        %s261 = sand.u32 %s44, 1
        %s262 = scalar_lea.sflag [#allocation4], %s261
        %s263 = sand.u32 %s44, 1
        %s264 = smul.addr %s263, 16
        %s265 = scalar_lea.vmem [#allocation3], %s264
        // Predicated region
        $region41: #{tpu_custom_call.1} parent=39 // pred_check
          %p266 = pneg %p57
        $region42: #{tpu_custom_call.1} parent=39 // pred_check_branch
          %268 = sbr.rel (%p266) target = $region44
        $region43: #{tpu_custom_call.1} parent=39 // pred_region
          %269 = dma.done %s262, 256
        $region44: #{tpu_custom_call.1} parent=39 // pred_fallthru
          _
        %s270 = sand.u32 %s44, 1
        %s271 = scalar_lea.sflag [#allocation4], %s270
        %s272 = sand.u32 %s44, 1
        %s273 = smul.addr %s272, 16
        %s274 = scalar_lea.vmem [#allocation3], %s273
        %p275 = pneg %p57
        %p276 = pneg %p54
        %p277 = scmp.lt.s32.totalorder %s26, 1
        %s278 = scalar_select %p277, %s26, 1
        %s279 = smul.addr %s278, 8
        %s280 = scalar_lea.vmem %s1, %s279
        %p281 = pneg %p83
        %p282 = pneg %p80
        %p283 = scmp.lt.s32.totalorder %s26, 1
        %s284 = scalar_select %p283, %s26, 1
        %s285 = smul.addr %s284, 2
        %s286 = scalar_lea.vmem %s2, %s285
        %p287 = pneg %p109
        %p288 = pneg %p106
        %p289 = scmp.lt.s32.totalorder %s26, 1
        %s290 = scalar_select %p289, %s26, 1
        %s291 = smul.addr %s290, 2
        %s292 = scalar_lea.vmem %s3, %s291
        %p293 = pneg %p135
        %p294 = pneg %p132
        %p295 = scmp.lt.s32.totalorder %s26, 1
        %s296 = scalar_select %p295, %s26, 1
        %s297 = scalar_lea.vmem %s4, %s296
        %p298 = pneg %p161
        %p299 = pneg %p158
        %p300 = pneg %p187
        %p301 = pneg %p184
        %s302 = sand.u32 %s174, 1
        %s303 = scalar_lea.sflag [#allocation5], %s302
        %s304 = sand.u32 %s174, 1
        %s305 = scalar_lea.vmem [#allocation6], %s304
        %s306 = smul.u32 2, %s27
        %p307 = scmp.lt.s32.totalorder %s26, 1
        %s308 = scalar_select %p307, %s26, 1
        %s309 = smul.addr %s308, 8
        %s310 = scalar_lea.vmem %s1, %s309
        %p311 = scmp.lt.s32.totalorder %s26, 1
        %s312 = scalar_select %p311, %s26, 1
        %s313 = smul.addr %s312, 2
        %s314 = scalar_lea.vmem %s2, %s313
        %p315 = scmp.lt.s32.totalorder %s26, 1
        %s316 = scalar_select %p315, %s26, 1
        %s317 = smul.addr %s316, 2
        %s318 = scalar_lea.vmem %s3, %s317
        %p319 = scmp.lt.s32.totalorder %s26, 1
        %s320 = scalar_select %p319, %s26, 1
        %s321 = scalar_lea.vmem %s4, %s320
        %p322 = scmp.eq.s32.totalorder %s27, 0
        // Predicated region
        $region45: #{tpu_custom_call.1} parent=39 // pred_check
          %p323 = pneg %p322
        $region46: #{tpu_custom_call.1} parent=39 // pred_check_branch
          %325 = sbr.rel (%p323) target = $region48
        $region47: #{tpu_custom_call.1} parent=39 // pred_region
          %vm326 = vcmask 64512
          %327 = vst.msk [vmem:[#allocation2] sm:$0xff] %vm326, 0.0
        $region48: #{tpu_custom_call.1} parent=39 // pred_fallthru
          _
        %v328 = vld [vmem:[%s265] sm:$0xff]
        %v329 = vld [vmem:[%s265 + $0x8] sm:$0xff]
        %v330 = vld [vmem:[%s310] sm:$0xff]
        %v331 = vlaneseq
        %v332 = vand.u32 %v331, 127
        %v333 = vadd.s32 %v332, 128
        %s334 = smul.u32 %s27, 256
        %v335 = vstv %s334
        %v336 = vadd.s32 %v332, %v335
        %v337 = vadd.s32 %v333, %v335
        %338 = vset.pattern.permute.xlu0 0
        %339 = vperm.xlu0 %338, %v330
        %v340 = vpop.permute.xlu0 %339
        %vm341 = vcmp.eq.s32.totalorder %v336, %v340
        %vm342 = vcmp.eq.s32.totalorder %v337, %v340
        %v343 = vsel %vm341, 1, 0
        %v344 = vsel %vm342, 1, 0
        %v345 = vcvt.s32.f32 %v343
        %v346 = vcvt.s32.f32 %v344
        %v347 = vld [vmem:[#allocation2] sm:$0xff]
        %348 = vmatprep.subr.mxu0 0.0
        %349 = vmatpush1.xpose.msra.mxu0 0.0
        %350 = vmatprep.subr.mxu0 0.0
        %351 = vmatpush1.xpose.msra.mxu0 0.0
        %352 = vmatprep.subr.mxu0 0.0
        %353 = vmatpush1.xpose.msra.mxu0 0.0
        %354 = vmatprep.subr.mxu0 0.0
        %355 = vmatpush1.xpose.msra.mxu0 0.0
        %356 = vmatprep.subr.mxu0 0.0
        %357 = vmatpush1.xpose.msra.mxu0 0.0
        %358 = vmatprep.subr.mxu0 0.0
        %359 = vmatpush1.xpose.msra.mxu0 0.0
        %360 = vmatprep.subr.mxu0 0.0
        %361 = vmatpush1.xpose.msra.mxu0 0.0
        %362 = vmatprep.subr.mxu0 0.0
        %363 = vmatpush1.xpose.msra.mxu0 0.0
        %364 = vmatprep.subr.mxu0 0.0
        %365 = vmatpush1.xpose.msra.mxu0 0.0
        %366 = vmatprep.subr.mxu0 0.0
        %367 = vmatpush1.xpose.msra.mxu0 0.0
        %368 = vmatprep.subr.mxu0 0.0
        %369 = vmatpush1.xpose.msra.mxu0 0.0
        %370 = vmatprep.subr.mxu0 0.0
        %371 = vmatpush1.xpose.msra.mxu0 0.0
        %372 = vmatprep.subr.mxu0 0.0
        %373 = vmatpush1.xpose.msra.mxu0 0.0
        %374 = vmatprep.subr.mxu0 0.0
        %375 = vmatpush1.xpose.msra.mxu0 0.0
        %376 = vmatprep.subr.mxu0 0.0
        %377 = vmatpush1.xpose.msra.mxu0 0.0
        %v378 = vand.u32 %v346, 4294901760
        %379 = vmatprep.subr.mxu0 %v378
        %v380 = vand.u32 %v345, 4294901760
        %381 = vmatpush1.xpose.msra.mxu0 %v380
        %382 = vmatprep.subr.mxu0 0.0
        %383 = vmatpush2.xpose.msra.mxu0 0.0
        %384 = vmatprep.subr.mxu0 0.0
        %385 = vmatpush2.xpose.msra.mxu0 0.0
        %386 = vmatprep.subr.mxu0 0.0
        %387 = vmatpush2.xpose.msra.mxu0 0.0
        %388 = vmatprep.subr.mxu0 0.0
        %389 = vmatpush2.xpose.msra.mxu0 0.0
        %390 = vmatprep.subr.mxu0 0.0
        %391 = vmatpush2.xpose.msra.mxu0 0.0
        %392 = vmatprep.subr.mxu0 0.0
        %393 = vmatpush2.xpose.msra.mxu0 0.0
        %394 = vmatprep.subr.mxu0 0.0
        %395 = vmatpush2.xpose.msra.mxu0 0.0
        %396 = vmatprep.subr.mxu0 0.0
        %397 = vmatpush2.xpose.msra.mxu0 0.0
        %398 = vmatprep.subr.mxu0 0.0
        %399 = vmatpush2.xpose.msra.mxu0 0.0
        %400 = vmatprep.subr.mxu0 0.0
        %401 = vmatpush2.xpose.msra.mxu0 0.0
        %402 = vmatprep.subr.mxu0 0.0
        %403 = vmatpush2.xpose.msra.mxu0 0.0
        %404 = vmatprep.subr.mxu0 0.0
        %405 = vmatpush2.xpose.msra.mxu0 0.0
        %406 = vmatprep.subr.mxu0 0.0
        %407 = vmatpush2.xpose.msra.mxu0 0.0
        %408 = vmatprep.subr.mxu0 0.0
        %409 = vmatpush2.xpose.msra.mxu0 0.0
        %410 = vmatprep.subr.mxu0 0.0
        %411 = vmatpush2.xpose.msra.mxu0 0.0
        %412 = vmatprep.subr.mxu0 0.0
        %413 = vmatpush2.xpose.msra.mxu0 0.0
        %v414 = vand.u32 %v329, 4294901760
        %v415 = vsub.f32 %v329, %v414
        %v416 = vand.u32 %v415, 4294901760
        %v417 = vsub.f32 %v415, %v416
        %v418 = vand.u32 %v417, 4294901760
        %419 = vmatprep.mubr.f32.mxu0 %v418
        %v420 = vand.u32 %v328, 4294901760
        %v421 = vsub.f32 %v328, %v420
        %v422 = vand.u32 %v421, 4294901760
        %v423 = vsub.f32 %v421, %v422
        %v424 = vand.u32 %v423, 4294901760
        %425 = vmatmul.mubr.f32.gmra.mxu0 %v424
        %v426 = vpop.f32.mrf.mxu0
        %v427 = vadd.f32 0.0, %v426
        %v428 = vpop.f32.mrf.mxu0
        %429 = vdwg.mxu0
        %430 = vmatprep.subr.mxu0 0.0
        %431 = vmatpush1.xpose.msra.mxu0 0.0
        %432 = vmatprep.subr.mxu0 0.0
        %433 = vmatpush1.xpose.msra.mxu0 0.0
        %434 = vmatprep.subr.mxu0 0.0
        %435 = vmatpush1.xpose.msra.mxu0 0.0
        %436 = vmatprep.subr.mxu0 0.0
        %437 = vmatpush1.xpose.msra.mxu0 0.0
        %438 = vmatprep.subr.mxu0 0.0
        %439 = vmatpush1.xpose.msra.mxu0 0.0
        %440 = vmatprep.subr.mxu0 0.0
        %441 = vmatpush1.xpose.msra.mxu0 0.0
        %442 = vmatprep.subr.mxu0 0.0
        %443 = vmatpush1.xpose.msra.mxu0 0.0
        %444 = vmatprep.subr.mxu0 0.0
        %445 = vmatpush1.xpose.msra.mxu0 0.0
        %446 = vmatprep.subr.mxu0 0.0
        %447 = vmatpush1.xpose.msra.mxu0 0.0
        %448 = vmatprep.subr.mxu0 0.0
        %449 = vmatpush1.xpose.msra.mxu0 0.0
        %450 = vmatprep.subr.mxu0 0.0
        %451 = vmatpush1.xpose.msra.mxu0 0.0
        %452 = vmatprep.subr.mxu0 0.0
        %453 = vmatpush1.xpose.msra.mxu0 0.0
        %454 = vmatprep.subr.mxu0 0.0
        %455 = vmatpush1.xpose.msra.mxu0 0.0
        %456 = vmatprep.subr.mxu0 0.0
        %457 = vmatpush1.xpose.msra.mxu0 0.0
        %458 = vmatprep.subr.mxu0 0.0
        %459 = vmatpush1.xpose.msra.mxu0 0.0
        %v460 = vand.u32 %v346, 4294901760
        %v461 = vsub.f32 %v346, %v460
        %v462 = vand.u32 %v461, 4294901760
        %v463 = vsub.f32 %v461, %v462
        %v464 = vand.u32 %v463, 4294901760
        %465 = vmatprep.subr.mxu0 %v464
        %v466 = vand.u32 %v345, 4294901760
        %v467 = vsub.f32 %v345, %v466
        %v468 = vand.u32 %v467, 4294901760
        %v469 = vsub.f32 %v467, %v468
        %v470 = vand.u32 %v469, 4294901760
        %471 = vmatpush1.xpose.msra.mxu0 %v470
        %472 = vmatprep.subr.mxu0 0.0
        %473 = vmatpush2.xpose.msra.mxu0 0.0
        %474 = vmatprep.subr.mxu0 0.0
        %475 = vmatpush2.xpose.msra.mxu0 0.0
        %476 = vmatprep.subr.mxu0 0.0
        %477 = vmatpush2.xpose.msra.mxu0 0.0
        %478 = vmatprep.subr.mxu0 0.0
        %479 = vmatpush2.xpose.msra.mxu0 0.0
        %480 = vmatprep.subr.mxu0 0.0
        %481 = vmatpush2.xpose.msra.mxu0 0.0
        %482 = vmatprep.subr.mxu0 0.0
        %483 = vmatpush2.xpose.msra.mxu0 0.0
        %484 = vmatprep.subr.mxu0 0.0
        %485 = vmatpush2.xpose.msra.mxu0 0.0
        %486 = vmatprep.subr.mxu0 0.0
        %487 = vmatpush2.xpose.msra.mxu0 0.0
        %488 = vmatprep.subr.mxu0 0.0
        %489 = vmatpush2.xpose.msra.mxu0 0.0
        %490 = vmatprep.subr.mxu0 0.0
        %491 = vmatpush2.xpose.msra.mxu0 0.0
        %492 = vmatprep.subr.mxu0 0.0
        %493 = vmatpush2.xpose.msra.mxu0 0.0
        %494 = vmatprep.subr.mxu0 0.0
        %495 = vmatpush2.xpose.msra.mxu0 0.0
        %496 = vmatprep.subr.mxu0 0.0
        %497 = vmatpush2.xpose.msra.mxu0 0.0
        %498 = vmatprep.subr.mxu0 0.0
        %499 = vmatpush2.xpose.msra.mxu0 0.0
        %500 = vmatprep.subr.mxu0 0.0
        %501 = vmatpush2.xpose.msra.mxu0 0.0
        %502 = vmatprep.subr.mxu0 0.0
        %503 = vmatpush2.xpose.msra.mxu0 0.0
        %v504 = vand.u32 %v329, 4294901760
        %505 = vmatprep.mubr.f32.mxu0 %v504
        %v506 = vand.u32 %v328, 4294901760
        %507 = vmatmul.mubr.f32.gmra.mxu0 %v506
        %v508 = vpop.f32.mrf.mxu0
        %v509 = vadd.f32 %v427, %v508
        %v510 = vpop.f32.mrf.mxu0
        %511 = vdwg.mxu0
        %512 = vmatprep.subr.mxu0 0.0
        %513 = vmatpush1.xpose.msra.mxu0 0.0
        %514 = vmatprep.subr.mxu0 0.0
        %515 = vmatpush1.xpose.msra.mxu0 0.0
        %516 = vmatprep.subr.mxu0 0.0
        %517 = vmatpush1.xpose.msra.mxu0 0.0
        %518 = vmatprep.subr.mxu0 0.0
        %519 = vmatpush1.xpose.msra.mxu0 0.0
        %520 = vmatprep.subr.mxu0 0.0
        %521 = vmatpush1.xpose.msra.mxu0 0.0
        %522 = vmatprep.subr.mxu0 0.0
        %523 = vmatpush1.xpose.msra.mxu0 0.0
        %524 = vmatprep.subr.mxu0 0.0
        %525 = vmatpush1.xpose.msra.mxu0 0.0
        %526 = vmatprep.subr.mxu0 0.0
        %527 = vmatpush1.xpose.msra.mxu0 0.0
        %528 = vmatprep.subr.mxu0 0.0
        %529 = vmatpush1.xpose.msra.mxu0 0.0
        %530 = vmatprep.subr.mxu0 0.0
        %531 = vmatpush1.xpose.msra.mxu0 0.0
        %532 = vmatprep.subr.mxu0 0.0
        %533 = vmatpush1.xpose.msra.mxu0 0.0
        %534 = vmatprep.subr.mxu0 0.0
        %535 = vmatpush1.xpose.msra.mxu0 0.0
        %536 = vmatprep.subr.mxu0 0.0
        %537 = vmatpush1.xpose.msra.mxu0 0.0
        %538 = vmatprep.subr.mxu0 0.0
        %539 = vmatpush1.xpose.msra.mxu0 0.0
        %540 = vmatprep.subr.mxu0 0.0
        %541 = vmatpush1.xpose.msra.mxu0 0.0
        %v542 = vand.u32 %v346, 4294901760
        %v543 = vsub.f32 %v346, %v542
        %544 = vmatprep.subr.mxu0 %v543
        %v545 = vand.u32 %v345, 4294901760
        %v546 = vsub.f32 %v345, %v545
        %547 = vmatpush1.xpose.msra.mxu0 %v546
        %548 = vmatprep.subr.mxu0 0.0
        %549 = vmatpush2.xpose.msra.mxu0 0.0
        %550 = vmatprep.subr.mxu0 0.0
        %551 = vmatpush2.xpose.msra.mxu0 0.0
        %552 = vmatprep.subr.mxu0 0.0
        %553 = vmatpush2.xpose.msra.mxu0 0.0
        %554 = vmatprep.subr.mxu0 0.0
        %555 = vmatpush2.xpose.msra.mxu0 0.0
        %556 = vmatprep.subr.mxu0 0.0
        %557 = vmatpush2.xpose.msra.mxu0 0.0
        %558 = vmatprep.subr.mxu0 0.0
        %559 = vmatpush2.xpose.msra.mxu0 0.0
        %560 = vmatprep.subr.mxu0 0.0
        %561 = vmatpush2.xpose.msra.mxu0 0.0
        %562 = vmatprep.subr.mxu0 0.0
        %563 = vmatpush2.xpose.msra.mxu0 0.0
        %564 = vmatprep.subr.mxu0 0.0
        %565 = vmatpush2.xpose.msra.mxu0 0.0
        %566 = vmatprep.subr.mxu0 0.0
        %567 = vmatpush2.xpose.msra.mxu0 0.0
        %568 = vmatprep.subr.mxu0 0.0
        %569 = vmatpush2.xpose.msra.mxu0 0.0
        %570 = vmatprep.subr.mxu0 0.0
        %571 = vmatpush2.xpose.msra.mxu0 0.0
        %572 = vmatprep.subr.mxu0 0.0
        %573 = vmatpush2.xpose.msra.mxu0 0.0
        %574 = vmatprep.subr.mxu0 0.0
        %575 = vmatpush2.xpose.msra.mxu0 0.0
        %576 = vmatprep.subr.mxu0 0.0
        %577 = vmatpush2.xpose.msra.mxu0 0.0
        %578 = vmatprep.subr.mxu0 0.0
        %579 = vmatpush2.xpose.msra.mxu0 0.0
        %v580 = vand.u32 %v329, 4294901760
        %v581 = vsub.f32 %v329, %v580
        %582 = vmatprep.mubr.f32.mxu0 %v581
        %v583 = vand.u32 %v328, 4294901760
        %v584 = vsub.f32 %v328, %v583
        %585 = vmatmul.mubr.f32.gmra.mxu0 %v584
        %v586 = vpop.f32.mrf.mxu0
        %v587 = vadd.f32 %v509, %v586
        %v588 = vpop.f32.mrf.mxu0
        %589 = vdwg.mxu0
        %590 = vmatprep.subr.mxu0 0.0
        %591 = vmatpush1.xpose.msra.mxu0 0.0
        %592 = vmatprep.subr.mxu0 0.0
        %593 = vmatpush1.xpose.msra.mxu0 0.0
        %594 = vmatprep.subr.mxu0 0.0
        %595 = vmatpush1.xpose.msra.mxu0 0.0
        %596 = vmatprep.subr.mxu0 0.0
        %597 = vmatpush1.xpose.msra.mxu0 0.0
        %598 = vmatprep.subr.mxu0 0.0
        %599 = vmatpush1.xpose.msra.mxu0 0.0
        %600 = vmatprep.subr.mxu0 0.0
        %601 = vmatpush1.xpose.msra.mxu0 0.0
        %602 = vmatprep.subr.mxu0 0.0
        %603 = vmatpush1.xpose.msra.mxu0 0.0
        %604 = vmatprep.subr.mxu0 0.0
        %605 = vmatpush1.xpose.msra.mxu0 0.0
        %606 = vmatprep.subr.mxu0 0.0
        %607 = vmatpush1.xpose.msra.mxu0 0.0
        %608 = vmatprep.subr.mxu0 0.0
        %609 = vmatpush1.xpose.msra.mxu0 0.0
        %610 = vmatprep.subr.mxu0 0.0
        %611 = vmatpush1.xpose.msra.mxu0 0.0
        %612 = vmatprep.subr.mxu0 0.0
        %613 = vmatpush1.xpose.msra.mxu0 0.0
        %614 = vmatprep.subr.mxu0 0.0
        %615 = vmatpush1.xpose.msra.mxu0 0.0
        %616 = vmatprep.subr.mxu0 0.0
        %617 = vmatpush1.xpose.msra.mxu0 0.0
        %618 = vmatprep.subr.mxu0 0.0
        %619 = vmatpush1.xpose.msra.mxu0 0.0
        %v620 = vand.u32 %v346, 4294901760
        %621 = vmatprep.subr.mxu0 %v620
        %v622 = vand.u32 %v345, 4294901760
        %623 = vmatpush1.xpose.msra.mxu0 %v622
        %624 = vmatprep.subr.mxu0 0.0
        %625 = vmatpush2.xpose.msra.mxu0 0.0
        %626 = vmatprep.subr.mxu0 0.0
        %627 = vmatpush2.xpose.msra.mxu0 0.0
        %628 = vmatprep.subr.mxu0 0.0
        %629 = vmatpush2.xpose.msra.mxu0 0.0
        %630 = vmatprep.subr.mxu0 0.0
        %631 = vmatpush2.xpose.msra.mxu0 0.0
        %632 = vmatprep.subr.mxu0 0.0
        %633 = vmatpush2.xpose.msra.mxu0 0.0
        %634 = vmatprep.subr.mxu0 0.0
        %635 = vmatpush2.xpose.msra.mxu0 0.0
        %636 = vmatprep.subr.mxu0 0.0
        %637 = vmatpush2.xpose.msra.mxu0 0.0
        %638 = vmatprep.subr.mxu0 0.0
        %639 = vmatpush2.xpose.msra.mxu0 0.0
        %640 = vmatprep.subr.mxu0 0.0
        %641 = vmatpush2.xpose.msra.mxu0 0.0
        %642 = vmatprep.subr.mxu0 0.0
        %643 = vmatpush2.xpose.msra.mxu0 0.0
        %644 = vmatprep.subr.mxu0 0.0
        %645 = vmatpush2.xpose.msra.mxu0 0.0
        %646 = vmatprep.subr.mxu0 0.0
        %647 = vmatpush2.xpose.msra.mxu0 0.0
        %648 = vmatprep.subr.mxu0 0.0
        %649 = vmatpush2.xpose.msra.mxu0 0.0
        %650 = vmatprep.subr.mxu0 0.0
        %651 = vmatpush2.xpose.msra.mxu0 0.0
        %652 = vmatprep.subr.mxu0 0.0
        %653 = vmatpush2.xpose.msra.mxu0 0.0
        %654 = vmatprep.subr.mxu0 0.0
        %655 = vmatpush2.xpose.msra.mxu0 0.0
        %v656 = vand.u32 %v329, 4294901760
        %v657 = vsub.f32 %v329, %v656
        %v658 = vand.u32 %v657, 4294901760
        %659 = vmatprep.mubr.f32.mxu0 %v658
        %v660 = vand.u32 %v328, 4294901760
        %v661 = vsub.f32 %v328, %v660
        %v662 = vand.u32 %v661, 4294901760
        %663 = vmatmul.mubr.f32.gmra.mxu0 %v662
        %v664 = vpop.f32.mrf.mxu0
        %v665 = vadd.f32 %v587, %v664
        %v666 = vpop.f32.mrf.mxu0
        %667 = vdwg.mxu0
        %668 = vmatprep.subr.mxu0 0.0
        %669 = vmatpush1.xpose.msra.mxu0 0.0
        %670 = vmatprep.subr.mxu0 0.0
        %671 = vmatpush1.xpose.msra.mxu0 0.0
        %672 = vmatprep.subr.mxu0 0.0
        %673 = vmatpush1.xpose.msra.mxu0 0.0
        %674 = vmatprep.subr.mxu0 0.0
        %675 = vmatpush1.xpose.msra.mxu0 0.0
        %676 = vmatprep.subr.mxu0 0.0
        %677 = vmatpush1.xpose.msra.mxu0 0.0
        %678 = vmatprep.subr.mxu0 0.0
        %679 = vmatpush1.xpose.msra.mxu0 0.0
        %680 = vmatprep.subr.mxu0 0.0
        %681 = vmatpush1.xpose.msra.mxu0 0.0
        %682 = vmatprep.subr.mxu0 0.0
        %683 = vmatpush1.xpose.msra.mxu0 0.0
        %684 = vmatprep.subr.mxu0 0.0
        %685 = vmatpush1.xpose.msra.mxu0 0.0
        %686 = vmatprep.subr.mxu0 0.0
        %687 = vmatpush1.xpose.msra.mxu0 0.0
        %688 = vmatprep.subr.mxu0 0.0
        %689 = vmatpush1.xpose.msra.mxu0 0.0
        %690 = vmatprep.subr.mxu0 0.0
        %691 = vmatpush1.xpose.msra.mxu0 0.0
        %692 = vmatprep.subr.mxu0 0.0
        %693 = vmatpush1.xpose.msra.mxu0 0.0
        %694 = vmatprep.subr.mxu0 0.0
        %695 = vmatpush1.xpose.msra.mxu0 0.0
        %696 = vmatprep.subr.mxu0 0.0
        %697 = vmatpush1.xpose.msra.mxu0 0.0
        %v698 = vand.u32 %v346, 4294901760
        %v699 = vsub.f32 %v346, %v698
        %v700 = vand.u32 %v699, 4294901760
        %701 = vmatprep.subr.mxu0 %v700
        %v702 = vand.u32 %v345, 4294901760
        %v703 = vsub.f32 %v345, %v702
        %v704 = vand.u32 %v703, 4294901760
        %705 = vmatpush1.xpose.msra.mxu0 %v704
        %706 = vmatprep.subr.mxu0 0.0
        %707 = vmatpush2.xpose.msra.mxu0 0.0
        %708 = vmatprep.subr.mxu0 0.0
        %709 = vmatpush2.xpose.msra.mxu0 0.0
        %710 = vmatprep.subr.mxu0 0.0
        %711 = vmatpush2.xpose.msra.mxu0 0.0
        %712 = vmatprep.subr.mxu0 0.0
        %713 = vmatpush2.xpose.msra.mxu0 0.0
        %714 = vmatprep.subr.mxu0 0.0
        %715 = vmatpush2.xpose.msra.mxu0 0.0
        %716 = vmatprep.subr.mxu0 0.0
        %717 = vmatpush2.xpose.msra.mxu0 0.0
        %718 = vmatprep.subr.mxu0 0.0
        %719 = vmatpush2.xpose.msra.mxu0 0.0
        %720 = vmatprep.subr.mxu0 0.0
        %721 = vmatpush2.xpose.msra.mxu0 0.0
        %722 = vmatprep.subr.mxu0 0.0
        %723 = vmatpush2.xpose.msra.mxu0 0.0
        %724 = vmatprep.subr.mxu0 0.0
        %725 = vmatpush2.xpose.msra.mxu0 0.0
        %726 = vmatprep.subr.mxu0 0.0
        %727 = vmatpush2.xpose.msra.mxu0 0.0
        %728 = vmatprep.subr.mxu0 0.0
        %729 = vmatpush2.xpose.msra.mxu0 0.0
        %730 = vmatprep.subr.mxu0 0.0
        %731 = vmatpush2.xpose.msra.mxu0 0.0
        %732 = vmatprep.subr.mxu0 0.0
        %733 = vmatpush2.xpose.msra.mxu0 0.0
        %734 = vmatprep.subr.mxu0 0.0
        %735 = vmatpush2.xpose.msra.mxu0 0.0
        %736 = vmatprep.subr.mxu0 0.0
        %737 = vmatpush2.xpose.msra.mxu0 0.0
        %v738 = vand.u32 %v329, 4294901760
        %739 = vmatprep.mubr.f32.mxu0 %v738
        %v740 = vand.u32 %v328, 4294901760
        %741 = vmatmul.mubr.f32.gmra.mxu0 %v740
        %v742 = vpop.f32.mrf.mxu0
        %v743 = vadd.f32 %v665, %v742
        %v744 = vpop.f32.mrf.mxu0
        %745 = vdwg.mxu0
        %746 = vmatprep.subr.mxu0 0.0
        %747 = vmatpush1.xpose.msra.mxu0 0.0
        %748 = vmatprep.subr.mxu0 0.0
        %749 = vmatpush1.xpose.msra.mxu0 0.0
        %750 = vmatprep.subr.mxu0 0.0
        %751 = vmatpush1.xpose.msra.mxu0 0.0
        %752 = vmatprep.subr.mxu0 0.0
        %753 = vmatpush1.xpose.msra.mxu0 0.0
        %754 = vmatprep.subr.mxu0 0.0
        %755 = vmatpush1.xpose.msra.mxu0 0.0
        %756 = vmatprep.subr.mxu0 0.0
        %757 = vmatpush1.xpose.msra.mxu0 0.0
        %758 = vmatprep.subr.mxu0 0.0
        %759 = vmatpush1.xpose.msra.mxu0 0.0
        %760 = vmatprep.subr.mxu0 0.0
        %761 = vmatpush1.xpose.msra.mxu0 0.0
        %762 = vmatprep.subr.mxu0 0.0
        %763 = vmatpush1.xpose.msra.mxu0 0.0
        %764 = vmatprep.subr.mxu0 0.0
        %765 = vmatpush1.xpose.msra.mxu0 0.0
        %766 = vmatprep.subr.mxu0 0.0
        %767 = vmatpush1.xpose.msra.mxu0 0.0
        %768 = vmatprep.subr.mxu0 0.0
        %769 = vmatpush1.xpose.msra.mxu0 0.0
        %770 = vmatprep.subr.mxu0 0.0
        %771 = vmatpush1.xpose.msra.mxu0 0.0
        %772 = vmatprep.subr.mxu0 0.0
        %773 = vmatpush1.xpose.msra.mxu0 0.0
        %774 = vmatprep.subr.mxu0 0.0
        %775 = vmatpush1.xpose.msra.mxu0 0.0
        %v776 = vand.u32 %v346, 4294901760
        %777 = vmatprep.subr.mxu0 %v776
        %v778 = vand.u32 %v345, 4294901760
        %779 = vmatpush1.xpose.msra.mxu0 %v778
        %780 = vmatprep.subr.mxu0 0.0
        %781 = vmatpush2.xpose.msra.mxu0 0.0
        %782 = vmatprep.subr.mxu0 0.0
        %783 = vmatpush2.xpose.msra.mxu0 0.0
        %784 = vmatprep.subr.mxu0 0.0
        %785 = vmatpush2.xpose.msra.mxu0 0.0
        %786 = vmatprep.subr.mxu0 0.0
        %787 = vmatpush2.xpose.msra.mxu0 0.0
        %788 = vmatprep.subr.mxu0 0.0
        %789 = vmatpush2.xpose.msra.mxu0 0.0
        %790 = vmatprep.subr.mxu0 0.0
        %791 = vmatpush2.xpose.msra.mxu0 0.0
        %792 = vmatprep.subr.mxu0 0.0
        %793 = vmatpush2.xpose.msra.mxu0 0.0
        %794 = vmatprep.subr.mxu0 0.0
        %795 = vmatpush2.xpose.msra.mxu0 0.0
        %796 = vmatprep.subr.mxu0 0.0
        %797 = vmatpush2.xpose.msra.mxu0 0.0
        %798 = vmatprep.subr.mxu0 0.0
        %799 = vmatpush2.xpose.msra.mxu0 0.0
        %800 = vmatprep.subr.mxu0 0.0
        %801 = vmatpush2.xpose.msra.mxu0 0.0
        %802 = vmatprep.subr.mxu0 0.0
        %803 = vmatpush2.xpose.msra.mxu0 0.0
        %804 = vmatprep.subr.mxu0 0.0
        %805 = vmatpush2.xpose.msra.mxu0 0.0
        %806 = vmatprep.subr.mxu0 0.0
        %807 = vmatpush2.xpose.msra.mxu0 0.0
        %808 = vmatprep.subr.mxu0 0.0
        %809 = vmatpush2.xpose.msra.mxu0 0.0
        %810 = vmatprep.subr.mxu0 0.0
        %811 = vmatpush2.xpose.msra.mxu0 0.0
        %v812 = vand.u32 %v329, 4294901760
        %813 = vmatprep.mubr.f32.mxu0 %v812
        %v814 = vand.u32 %v328, 4294901760
        %815 = vmatmul.mubr.f32.gmra.mxu0 %v814
        %v816 = vpop.f32.mrf.mxu0
        %v817 = vadd.f32 %v743, %v816
        %v818 = vpop.f32.mrf.mxu0
        %819 = vdwg.mxu0
        %v820 = vadd.f32 %v347, %v817
        %vm821 = vcmask 64512
        %822 = vst.msk [vmem:[#allocation2] sm:$0xff] %vm821, %v820
        // Predicated region
        $region49: #{tpu_custom_call.1} parent=39 // pred_check
          %p823 = pneg %p322
        $region50: #{tpu_custom_call.1} parent=39 // pred_check_branch
          %825 = sbr.rel (%p823) target = $region52
        $region51: #{tpu_custom_call.1} parent=39 // pred_region
          %v826 = vld [vmem:[#allocation2] sm:$0xff]
          %v827 = vld [vmem:[%s321] sm:$0x1]
          %v828 = vld [vmem:[%s314] sm:$0x3]
          %v829 = vld [vmem:[%s318] sm:$0x3]
          %v830 = vmul.f32 %v826, %v827
          %v832 = vlaneseq
          %v833 = vshrl.u32 %v832, 7
          %v834 = vsub.s32 0, %v833
          %v835 = vrot.slane %v827, %v834
          %v837 = vmul.f32 %v826, %v835
          %v839 = vrot.slane %v837, 1
          %v841 = vmax.f32 %v830, %v839
          %v842 = vsub.f32 %v830, %v841
          %v843 = vmul.f32 %v842, 1.442695
          %v844 = vpow.pop %v843
          %v846 = vrot.slane %v841, 7
          %v848 = vsub.f32 %v837, %v846
          %v849 = vmul.f32 %v848, 1.442695
          %v850 = vpow.pop %v849
          %v852 = vrot.slane %v850, 1
          %v854 = vadd.f32 %v844, %v852
          %v855 = vlog2.pop %v854
          %v856 = vmul.f32 %v855, 0.6931472
          %v857 = vadd.f32 %v841, %v856
          %vm858 = vcmp.ne.s32.totalorder %v828, 0
          %v859 = vsel %vm858, %v839, %v830
          %v860 = vsub.f32 %v857, %v859
          %v861 = vmax.f32 %v837, %v839
          %v862 = vsub.f32 %v837, %v861
          %v863 = vmul.f32 %v862, 1.442695
          %v864 = vpow.pop %v863
          %v866 = vrot.slane %v861, 7
          %v868 = vsub.f32 %v837, %v866
          %v869 = vmul.f32 %v868, 1.442695
          %v870 = vpow.pop %v869
          %v872 = vrot.slane %v870, 1
          %v874 = vadd.f32 %v864, %v872
          %v875 = vlog2.pop %v874
          %v876 = vmul.f32 %v875, 0.6931472
          %v877 = vadd.f32 %v861, %v876
          %v878 = vrot.slane %v837, 4
          %v880 = vrot.slane %v837, 3
          %v882 = vsel %vm858, %v878, %v880
          %v884 = vrot.slane %v882, 5
          %v886 = vsub.f32 %v877, %v884
          %v887 = vsel %vm858, 1, 0
          %v888 = vcvt.s32.f32 %v887
          %v889 = vand.u32 2147483647, %v829
          %vm890 = vcmp.le.f32.partialorder %v889, 0.7853982
          %vm891 = vcmp.lt.s32.totalorder %v829, 0
          %v892 = vand.u32 %v829, 2139095040
          %v893 = vshrl.u32 %v892, 23
          %v894 = vsub.s32 %v893, 127
          %v895 = vand.u32 2147483647, %v829
          %v896 = vand.u32 %v895, 8388607
          %v897 = vor.u32 %v896, 8388608
          %v898 = vsub.s32 0, %v897
          %v899 = vadd.s32 %v894, 1
          %vm900 = vcmp.gt.s32.totalorder %v899, 0
          %v901 = vsel %vm900, %v899, 0
          %v902 = vshrl.u32 %v901, 5
          %v903 = vand.u32 %v901, 31
          %v904 = vsub.s32 32, %v903
          %v905 = vshrl.u32 683565275, %v904
          %v906 = vshll.u32 683565275, %v903
          %v907 = vshrl.u32 2475754826, %v904
          %v908 = vor.u32 %v906, %v907
          %v909 = vshll.u32 2475754826, %v903
          %v910 = vshrl.u32 2131351028, %v904
          %v911 = vor.u32 %v909, %v910
          %v912 = vshll.u32 2131351028, %v903
          %v913 = vshrl.u32 2102212464, %v904
          %v914 = vor.u32 %v912, %v913
          %v915 = vshll.u32 2102212464, %v903
          %v916 = vshrl.u32 920167782, %v904
          %v917 = vor.u32 %v915, %v916
          %v918 = vshll.u32 920167782, %v903
          %v919 = vshrl.u32 1326507024, %v904
          %v920 = vor.u32 %v918, %v919
          %vm921 = vcmp.lt.s32.totalorder %v902, 1
          %vm922 = vcmp.lt.s32.totalorder %v902, 2
          %vm923 = vcmp.lt.s32.totalorder %v902, 3
          %vm924 = vcmp.lt.s32.totalorder %v902, 4
          %v925 = vsel %vm921, %v905, %v908
          %v926 = vsel %vm924, %v914, 2102212464
          %v927 = vsel %vm923, %v911, %v926
          %v928 = vsel %vm922, %v925, %v927
          %v929 = vsel %vm921, %v908, %v911
          %v930 = vsel %vm924, %v917, 920167782
          %v931 = vsel %vm923, %v914, %v930
          %v932 = vsel %vm922, %v929, %v931
          %v933 = vsel %vm921, %v911, %v914
          %v934 = vsel %vm924, %v920, 1326507024
          %v935 = vsel %vm923, %v917, %v934
          %v936 = vsel %vm922, %v933, %v935
          %v937 = vshll.u32 %v897, 8
          %v938 = vmul.u32.u64.compose %v937, %v936
          %v939 = vextract.low.u32 %v938
          %v940 = vextract.high.u32 %v938
          %v941 = vmul.u32.u64.compose %v937, %v932
          %v942 = vextract.low.u32 %v941
          %v943 = vextract.high.u32 %v941
          %v944 = vmul.u32 %v937, %v928
          %v945 = vadd.s32 %v940, %v942
          %vm946 = vc.u32 %v940, %v942
          %v947 = vadd.s32 %v943, 1
          %v948 = vsel %vm946, %v947, %v943
          %v949 = vadd.s32 %v944, %v948
          %v950 = vadd.s32 %v949, 536870912
          %v951 = vshrl.u32 %v950, 30
          %v952 = vshll.u32 %v951, 30
          %v953 = vsub.s32 %v949, %v952
          %vm954 = vcmp.lt.s32.totalorder %v953, 0
          %v955 = vsub.s32 0, %v953
          %v956 = vsel %vm954, %v955, %v953
          %v957 = vclz %v956
          %v958 = vsub.s32 %v957, 2
          %vm959 = vcmp.gt.s32.totalorder 0, %v958
          %v960 = vsel %vm959, 0, %v958
          %v961 = vsub.s32 32, %v960
          %v962 = vshll.u32 %v953, %v960
          %v963 = vshrl.u32 %v945, %v961
          %v964 = vor.u32 %v962, %v963
          %v965 = vsub.s32 4294967266, %v960
          %v966 = vadd.s32 %v965, 127
          %v967 = vshll.u32 %v966, 23
          %v968 = vor.u32 4788187, %v967
          %v969 = vand.u32 2147483647, %v968
          %v971 = vcvt.s32.f32 %v964
          %v972 = vmul.f32 %v971, %v969
          %v973 = vxor.u32 %v972, 2147483648
          %v974 = vsel %vm891, %v973, %v972
          %v975 = vsub.s32 4, %v951
          %v976 = vsel %vm891, %v975, %v951
          %v977 = vsel %vm890, %v829, %v974
          %v978 = vsel %vm890, 0, %v976
          %v979 = vcosq.f32.pop %v977
          %v980 = vsinq.f32.pop %v977
          %vm981 = vweird.f32 %v829
          %v982 = vadd.s32 %v978, 3
          %v983 = vand.u32 %v982, 3
          %vm984 = vcmp.lt.s32.totalorder %v983, 2
          %vm985 = vcmp.eq.s32.totalorder %v983, 0
          %v986 = vxor.u32 %v980, 2147483648
          %v987 = vsel %vm985, %v979, %v986
          %vm988 = vcmp.eq.s32.totalorder %v983, 2
          %v989 = vxor.u32 %v979, 2147483648
          %v990 = vsel %vm988, %v989, %v980
          %v991 = vsel %vm984, %v987, %v990
          %v992 = vsel %vm981, nan, %v991
          %v994 = vrot.slane %v992, 6
          %v996 = vsub.f32 %v826, %v994
          %v997 = vand.u32 2147483647, %v996
          %vm998 = vcmp.lt.f32.partialorder %v997, 1.0
          %v999 = vmul.f32 %v996, 0.5
          %v1000 = vmul.f32 %v999, %v996
          %v1001 = vsub.f32 %v997, 0.5
          %v1002 = vsel %vm998, %v1000, %v1001
          %v1003 = vand.u32 2147483647, %v829
          %vm1004 = vcmp.le.f32.partialorder %v1003, 0.7853982
          %vm1005 = vcmp.lt.s32.totalorder %v829, 0
          %v1006 = vand.u32 %v829, 2139095040
          %v1007 = vshrl.u32 %v1006, 23
          %v1008 = vsub.s32 %v1007, 127
          %v1009 = vand.u32 2147483647, %v829
          %v1010 = vand.u32 %v1009, 8388607
          %v1011 = vor.u32 %v1010, 8388608
          %v1012 = vsub.s32 0, %v1011
          %v1013 = vadd.s32 %v1008, 1
          %vm1014 = vcmp.gt.s32.totalorder %v1013, 0
          %v1015 = vsel %vm1014, %v1013, 0
          %v1016 = vshrl.u32 %v1015, 5
          %v1017 = vand.u32 %v1015, 31
          %v1018 = vsub.s32 32, %v1017
          %v1019 = vshrl.u32 683565275, %v1018
          %v1020 = vshll.u32 683565275, %v1017
          %v1021 = vshrl.u32 2475754826, %v1018
          %v1022 = vor.u32 %v1020, %v1021
          %v1023 = vshll.u32 2475754826, %v1017
          %v1024 = vshrl.u32 2131351028, %v1018
          %v1025 = vor.u32 %v1023, %v1024
          %v1026 = vshll.u32 2131351028, %v1017
          %v1027 = vshrl.u32 2102212464, %v1018
          %v1028 = vor.u32 %v1026, %v1027
          %v1029 = vshll.u32 2102212464, %v1017
          %v1030 = vshrl.u32 920167782, %v1018
          %v1031 = vor.u32 %v1029, %v1030
          %v1032 = vshll.u32 920167782, %v1017
          %v1033 = vshrl.u32 1326507024, %v1018
          %v1034 = vor.u32 %v1032, %v1033
          %vm1035 = vcmp.lt.s32.totalorder %v1016, 1
          %vm1036 = vcmp.lt.s32.totalorder %v1016, 2
          %vm1037 = vcmp.lt.s32.totalorder %v1016, 3
          %vm1038 = vcmp.lt.s32.totalorder %v1016, 4
          %v1039 = vsel %vm1035, %v1019, %v1022
          %v1040 = vsel %vm1038, %v1028, 2102212464
          %v1041 = vsel %vm1037, %v1025, %v1040
          %v1042 = vsel %vm1036, %v1039, %v1041
          %v1043 = vsel %vm1035, %v1022, %v1025
          %v1044 = vsel %vm1038, %v1031, 920167782
          %v1045 = vsel %vm1037, %v1028, %v1044
          %v1046 = vsel %vm1036, %v1043, %v1045
          %v1047 = vsel %vm1035, %v1025, %v1028
          %v1048 = vsel %vm1038, %v1034, 1326507024
          %v1049 = vsel %vm1037, %v1031, %v1048
          %v1050 = vsel %vm1036, %v1047, %v1049
          %v1051 = vshll.u32 %v1011, 8
          %v1052 = vmul.u32.u64.compose %v1051, %v1050
          %v1053 = vextract.low.u32 %v1052
          %v1054 = vextract.high.u32 %v1052
          %v1055 = vmul.u32.u64.compose %v1051, %v1046
          %v1056 = vextract.low.u32 %v1055
          %v1057 = vextract.high.u32 %v1055
          %v1058 = vmul.u32 %v1051, %v1042
          %v1059 = vadd.s32 %v1054, %v1056
          %vm1060 = vc.u32 %v1054, %v1056
          %v1061 = vadd.s32 %v1057, 1
          %v1062 = vsel %vm1060, %v1061, %v1057
          %v1063 = vadd.s32 %v1058, %v1062
          %v1064 = vadd.s32 %v1063, 536870912
          %v1065 = vshrl.u32 %v1064, 30
          %v1066 = vshll.u32 %v1065, 30
          %v1067 = vsub.s32 %v1063, %v1066
          %vm1068 = vcmp.lt.s32.totalorder %v1067, 0
          %v1069 = vsub.s32 0, %v1067
          %v1070 = vsel %vm1068, %v1069, %v1067
          %v1071 = vclz %v1070
          %v1072 = vsub.s32 %v1071, 2
          %vm1073 = vcmp.gt.s32.totalorder 0, %v1072
          %v1074 = vsel %vm1073, 0, %v1072
          %v1075 = vsub.s32 32, %v1074
          %v1076 = vshll.u32 %v1067, %v1074
          %v1077 = vshrl.u32 %v1059, %v1075
          %v1078 = vor.u32 %v1076, %v1077
          %v1079 = vsub.s32 4294967266, %v1074
          %v1080 = vadd.s32 %v1079, 127
          %v1081 = vshll.u32 %v1080, 23
          %v1082 = vor.u32 4788187, %v1081
          %v1083 = vand.u32 2147483647, %v1082
          %v1085 = vcvt.s32.f32 %v1078
          %v1086 = vmul.f32 %v1085, %v1083
          %v1087 = vxor.u32 %v1086, 2147483648
          %v1088 = vsel %vm1005, %v1087, %v1086
          %v1089 = vsub.s32 4, %v1065
          %v1090 = vsel %vm1005, %v1089, %v1065
          %v1091 = vsel %vm1004, %v829, %v1088
          %v1092 = vsel %vm1004, 0, %v1090
          %v1093 = vcosq.f32.pop %v1091
          %v1094 = vsinq.f32.pop %v1091
          %vm1095 = vweird.f32 %v829
          %v1096 = vand.u32 %v1092, 3
          %vm1097 = vcmp.lt.s32.totalorder %v1096, 2
          %vm1098 = vcmp.eq.s32.totalorder %v1096, 0
          %v1099 = vxor.u32 %v1094, 2147483648
          %v1100 = vsel %vm1098, %v1093, %v1099
          %vm1101 = vcmp.eq.s32.totalorder %v1096, 2
          %v1102 = vxor.u32 %v1093, 2147483648
          %v1103 = vsel %vm1101, %v1102, %v1094
          %v1104 = vsel %vm1097, %v1100, %v1103
          %v1105 = vsel %vm1095, nan, %v1104
          %v1107 = vrot.slane %v1105, 5
          %v1109 = vsub.f32 %v826, %v1107
          %v1110 = vand.u32 2147483647, %v1109
          %vm1111 = vcmp.lt.f32.partialorder %v1110, 1.0
          %v1112 = vmul.f32 %v1109, 0.5
          %v1113 = vmul.f32 %v1112, %v1109
          %v1114 = vsub.f32 %v1110, 0.5
          %v1115 = vsel %vm1111, %v1113, %v1114
          %v1117 = vrot.slane %v1115, 1
          %v1119 = vadd.f32 %v1002, %v1117
          %v1121 = vrot.slane %v1119, 2
          %v1123 = vmul.f32 %v888, %v1121
          %v1124 = vrot.slane %v992, 3
          %v1126 = vsub.f32 %v826, %v1124
          %v1127 = vand.u32 2147483647, %v1126
          %vm1128 = vcmp.lt.f32.partialorder %v1127, 1.0
          %v1129 = vmul.f32 %v1126, 0.5
          %v1130 = vmul.f32 %v1129, %v1126
          %v1131 = vsub.f32 %v1127, 0.5
          %v1132 = vsel %vm1128, %v1130, %v1131
          %v1133 = vrot.slane %v1105, 2
          %v1135 = vsub.f32 %v826, %v1133
          %v1136 = vand.u32 2147483647, %v1135
          %vm1137 = vcmp.lt.f32.partialorder %v1136, 1.0
          %v1138 = vmul.f32 %v1135, 0.5
          %v1139 = vmul.f32 %v1138, %v1135
          %v1140 = vsub.f32 %v1136, 0.5
          %v1141 = vsel %vm1137, %v1139, %v1140
          %v1143 = vrot.slane %v1141, 1
          %v1145 = vadd.f32 %v1132, %v1143
          %v1147 = vrot.slane %v1145, 5
          %v1149 = vmul.f32 %v888, %v1147
          %vm1150 = vcmask 57344
          %v1151 = vsel %vm1150, %v860, 0.0
          %1152 = vadd.xlane.f32.xlu0 %v1151
          %v1153 = vpop.xlane.xlu0 %1152
          %vm1154 = vcmask 61444
          %v1155 = vsel %vm1154, %v886, 0.0
          %1156 = vadd.xlane.f32.xlu0 %v1155
          %v1157 = vpop.xlane.xlu0 %1156
          %v1158 = vsel %vm1150, %v1123, 0.0
          %1159 = vadd.xlane.f32.xlu0 %v1158
          %v1160 = vpop.xlane.xlu0 %1159
          %vm1161 = vcmask 58369
          %v1162 = vsel %vm1161, %v1149, 0.0
          %1163 = vadd.xlane.f32.xlu0 %v1162
          %v1164 = vpop.xlane.xlu0 %1163
          %v1165 = vsel %vm1150, %v888, 0.0
          %1166 = vadd.xlane.f32.xlu0 %v1165
          %v1167 = vpop.xlane.xlu0 %1166
          %v1168 = vsel %vm1161, %v888, 0.0
          %1169 = vadd.xlane.f32.xlu0 %v1168
          %v1170 = vpop.xlane.xlu0 %1169
          %v1172 = vrot.slane %v1157, 4
          %v1175 = vrot.slane %v1164, 1
          %v1178 = vrot.slane %v1170, 1
          %vm1180 = vcmask 7168
          %v1181 = vsel %vm1180, %v1153, %v1172
          %vm1182 = vcmask 15360
          %v1183 = vsel %vm1182, %v1181, %v1160
          %vm1184 = vcmask 23552
          %v1185 = vsel %vm1184, %v1183, %v1175
          %vm1186 = vcmask 31744
          %v1187 = vsel %vm1186, %v1185, %v1167
          %vm1188 = vcmask 39936
          %v1189 = vsel %vm1188, %v1187, %v1178
          %vm1190 = vcmask 48128
          %v1191 = vsel %vm1190, %v1189, 0.0
          %1192 = vst.msk [vmem:[%s305] sm:$0x1] %vm1150, %v1191
        $region52: #{tpu_custom_call.1} parent=39 // pred_fallthru
          _
        %s1193 = sand.u32 %s174, 1
        %s1194 = scalar_lea.sflag [#allocation5], %s1193
        %s1195 = sand.u32 %s174, 1
        %s1196 = scalar_lea.vmem [#allocation6], %s1195
        // Predicated region
        $region53: #{tpu_custom_call.1} parent=39 // pred_check
          %p1197 = pneg %p184
        $region54: #{tpu_custom_call.1} parent=39 // pred_check_branch
          %1199 = sbr.rel (%p1197) target = $region56
        $region55: #{tpu_custom_call.1} parent=39 // pred_region
          %s1201 = ssub.s32 16, 16
          %1202 = vsyncadd %s1194, %s1201
          %s1203 = smul.addr %s26, 16
          %s1204 = scalar_lea.hbm %s5, %s1203
          %s1206 = sshll.u32 %s1196, 4
          %s1207 = int_to_ptr.vmem [resolvable:$true] %s1206
          %1209 = dma.vmem_to_hbm [thread:$0]  %s1207, 16, %s1204, %s1194
        $region56: #{tpu_custom_call.1} parent=39 // pred_fallthru
          _
      $region40: #{tpu_custom_call.1} parent=5 // pred_fallthru
        _
      %p1210 = scmp.le.s32.totalorder 2, %s17
      // Predicated region
      $region57: #{tpu_custom_call.1} parent=5 // pred_check
        %p1211 = pneg %p1210
      $region58: #{tpu_custom_call.1} parent=5 // pred_check_branch
        %1213 = sbr.rel (%p1211) target = $region60
      $region59: #{tpu_custom_call.1} parent=5 // pred_region
        %s1214 = ssub.s32 %s17, 2
        // Predicated region
        $region61: #{tpu_custom_call.1} parent=59 // pred_check
          %p1215 = pneg %p190
        $region62: #{tpu_custom_call.1} parent=59 // pred_check_branch
          %1217 = sbr.rel (%p1215) target = $region64
        $region63: #{tpu_custom_call.1} parent=59 // pred_region
          %s1218 = sand.u32 %s175, 1
          %s1219 = scalar_lea.sflag [#allocation5], %s1218
          %s1220 = sand.u32 %s175, 1
          %s1221 = scalar_lea.vmem [#allocation6], %s1220
          %1222 = dma.done %s1219, 16
        $region64: #{tpu_custom_call.1} parent=59 // pred_fallthru
          _
      $region60: #{tpu_custom_call.1} parent=5 // pred_fallthru
        _
    $region6: #{tpu_custom_call.1} parent=1 // loop_footer
      %s21 = sadd.s32 1, %s17
    $region7: #{tpu_custom_call.1} parent=1 // loop_footer_branch
      %16 = sbr.rel target = $region3
    $region8: #{tpu_custom_call.1} parent=1 // loop_exit
      _
    %1223 = vsyncpa [#allocation4], 1
    %s1224 = scalar_lea.sflag [#allocation4], 1
    %1225 = vsyncpa %s1224, 1
    %1226 = vsyncpa [#allocation5], 1
    %s1227 = scalar_lea.sflag [#allocation5], 1
    %1228 = vsyncpa %s1227, 1

</llo_original>
